<compile_context>
chip_gen: v7x
topology: tpu7x:2x2x1
jax: 0.10.0
libtpu: 0.0.40
codegen_flags: <defaults>
</compile_context>

<pallas_src>
import jax
import jax.numpy as jnp
from jax.experimental import pallas as pl
from jax.experimental.pallas import tpu as pltpu


def _make_classifier_kernel(filter_sizes):
    n_conv = len(filter_sizes)

    def kernel(*refs):
        # refs layout (inputs..., output):
        #   x_ref (TB,S,H), watt_ref (1,H),
        #   [wconv_i (L_i,H,F), bconv_i (1,F)] * n_conv,
        #   [fc1w_i (F,D1)] * n_conv,               # row-chunks of the fused Linear
        #   fc1b (1,D1), fc2w (D1,L), fc2b (1,L),
        #   o_ref (TB,L)
        it = iter(refs)
        x_ref = next(it)
        watt_ref = next(it)
        conv_refs = [(next(it), next(it)) for _ in range(n_conv)]
        fc1w_refs = [next(it) for _ in range(n_conv)]
        fc1b_ref = next(it)
        fc2w_ref = next(it)
        fc2b_ref = next(it)
        o_ref = next(it)

        x = x_ref[...]                                       # (TB, S, H) f32
        w_att = watt_ref[...]                                # (1, H)

        # ---- Attention pooling: softmax over the sequence axis (torch dim=1) ----
        # scores laid out (TB, S): sequence on the lane axis -> lane-dense softmax.
        scores = jnp.sum(x * w_att[None, :, :], axis=-1)     # (TB, S)
        m = jnp.max(scores, axis=-1, keepdims=True)          # (TB, 1)
        e = jnp.exp(scores - m)                              # (TB, S)
        denom = jnp.sum(e, axis=-1, keepdims=True)           # (TB, 1)
        attn = e * pl.reciprocal(denom, approx=True)         # divide on the idle EUP slot
        pooled = jnp.sum(x * attn[:, :, None], axis=1)       # (TB, H)

        # ---- TextCNN on the length-1 sequence + fused cat->Linear ----
        hidden_acc = None
        for (wconv_ref, bconv_ref), fc1w_ref in zip(conv_refs, fc1w_refs):
            l_out = wconv_ref.shape[0]
            b_c = bconv_ref[...]                             # (1, F)
            y = None
            for t in range(l_out):                           # static unroll (<=2 taps)
                yt = jnp.dot(pooled, wconv_ref[t],
                             preferred_element_type=jnp.float32) + b_c
                y = yt if y is None else jnp.maximum(y, yt)  # max_pool1d over positions
            y = jnp.maximum(y, 0.0)                          # ReLU (commutes with max)
            # torch.cat + Linear == sum over per-filter chunks of fc1 weight rows
            h = jnp.dot(y, fc1w_ref[...], preferred_element_type=jnp.float32)
            hidden_acc = h if hidden_acc is None else hidden_acc + h

        h1 = jnp.tanh(hidden_acc + fc1b_ref[...])            # (TB, D1), tanh on EUP
        logits = jnp.dot(h1, fc2w_ref[...],
                         preferred_element_type=jnp.float32) + fc2b_ref[...]
        o_ref[...] = logits.astype(o_ref.dtype)

    return kernel


def _pick_batch_tile(batch, seq, hidden, itemsize, x_tile_budget_bytes):
    """Largest batch tile whose double-buffered (TB,S,H) x tile fits the budget."""
    bytes_per_row = 2 * seq * hidden * itemsize              # 2x: pipeline double-buffering
    tb = max(1, x_tile_budget_bytes // bytes_per_row)
    if tb >= batch:
        return batch                                         # whole batch (== full dim)
    # keep the (TB, L) output block (8,128)-legal when tiling the batch
    return min(batch, max(8, (tb // 8) * 8))


def classifier_head_forward(x, w_att, conv_weights, conv_biases, filter_sizes,
                            fc1_w, fc1_b, fc2_w, fc2_b, *, tb=None,
                            x_tile_budget_bytes=16 * 1024 * 1024):
    """x: (B,S,H) f32 (BERT last_hidden_state); conv_weights[i]: torch Conv1d layout
    (F,H,f_i); fc1_w: (len(filter_sizes)*F, D1); fc2_w: (D1, L). Returns (B, L)."""
    B, S, H = x.shape
    F = conv_weights[0].shape[0]
    D1 = fc1_w.shape[1]
    L = fc2_w.shape[1]
    n_conv = len(filter_sizes)

    itemsize = jnp.dtype(x.dtype).itemsize
    if tb is None:
        tb = _pick_batch_tile(B, S, H, itemsize, x_tile_budget_bytes)
    tb = min(tb, B)
    grid = (pl.cdiv(B, tb),)

    ops = [x, w_att.reshape(1, H)]
    in_specs = [
        pl.BlockSpec((tb, S, H), lambda b: (b, 0, 0)),
        pl.BlockSpec((1, H), lambda b: (0, 0)),
    ]
    # Pre-slice the Conv1d taps that a length-1 input actually touches:
    # output position t uses kernel tap j = f//2 - t  ->  w_eff[t] = W[:,:,j].T  (H, F)
    for W, bvec, f in zip(conv_weights, conv_biases, filter_sizes):
        p = f // 2
        l_out = 1 + 2 * p - f + 1
        w_eff = jnp.stack([W[:, :, p - t].T for t in range(l_out)], axis=0)  # (L_out,H,F)
        ops.append(w_eff)
        in_specs.append(pl.BlockSpec((l_out, H, F), lambda b: (0, 0, 0)))
        ops.append(bvec.reshape(1, F))
        in_specs.append(pl.BlockSpec((1, F), lambda b: (0, 0)))
    # Row-chunk fc1 so the kernel never materializes the non-128-aligned concat.
    for i in range(n_conv):
        ops.append(fc1_w[i * F:(i + 1) * F, :])                              # (F, D1)
        in_specs.append(pl.BlockSpec((F, D1), lambda b: (0, 0)))
    ops += [fc1_b.reshape(1, D1), fc2_w, fc2_b.reshape(1, L)]
    in_specs += [pl.BlockSpec((1, D1), lambda b: (0, 0)),
                 pl.BlockSpec((D1, L), lambda b: (0, 0)),
                 pl.BlockSpec((1, L), lambda b: (0, 0))]

    kernel = _make_classifier_kernel(tuple(filter_sizes))
    return pl.pallas_call(
        kernel,
        out_shape=jax.ShapeDtypeStruct((B, L), x.dtype),
        grid=grid,
        in_specs=in_specs,
        out_specs=pl.BlockSpec((tb, L), lambda b: (b, 0)),
        compiler_params=pltpu.CompilerParams(
            # batch-tile axis is embarrassingly parallel (lets v7x shard over both TCs)
            dimension_semantics=("parallel",),
            # safe on v5e/v6e (128 MiB VMEM) and v7x (64 MiB)
            vmem_limit_bytes=32 * 1024 * 1024,
        ),
    )(*ops)


def classifier_head_reference(x, w_att, conv_weights, conv_biases, filter_sizes,
                              fc1_w, fc1_b, fc2_w, fc2_b):
    """Pure-JAX reference mirroring the PyTorch module (Attention -> TextCNN -> MLP)."""
    scores = jnp.einsum("bsh,h->bs", x, w_att)
    attn = jax.nn.softmax(scores, axis=1)
    pooled = jnp.sum(x * attn[..., None], axis=1)            # Attention(x): (B, H)
    seq = pooled[:, :, None]                                  # unsqueeze(1).transpose(1,2)
    feats = []
    for W, bvec, f in zip(conv_weights, conv_biases, filter_sizes):
        p = f // 2
        padded = jnp.pad(seq, ((0, 0), (0, 0), (p, p)))       # (B, H, 1+2p)
        l_out = 1 + 2 * p - f + 1
        cols = []
        for t in range(l_out):                                # explicit Conv1d
            win = padded[:, :, t:t + f]                       # (B, H, f)
            cols.append(jnp.einsum("bhj,chj->bc", win, W) + bvec)
        y = jax.nn.relu(jnp.stack(cols, axis=-1))             # (B, F, L_out)
        feats.append(jnp.max(y, axis=-1))                     # max_pool1d over full length
    feat = jnp.concatenate(feats, axis=1)                     # (B, n*F)
    h1 = jnp.tanh(feat @ fc1_w + fc1_b)
    return h1 @ fc2_w + fc2_b


if __name__ == "__main__":
    key = jax.random.PRNGKey(0)
    keys = jax.random.split(key, 12)

    # Small shapes consistent with the module (real: H=768, F=100, D1=128, L=2).
    B, S, H = 8, 16, 128
    F, filter_sizes, D1, L = 32, (3, 4, 5), 128, 2

    x = jax.random.normal(keys[0], (B, S, H), dtype=jnp.float32)
    # nn.init.uniform_(weight, -0.1, 0.1) equivalent, deterministic
    w_att = jax.random.uniform(keys[1], (H,), jnp.float32, -0.1, 0.1)
    conv_ws = [jax.random.normal(keys[2 + i], (F, H, f), dtype=jnp.float32) * 0.1
               for i, f in enumerate(filter_sizes)]
    conv_bs = [jax.random.normal(keys[5 + i], (F,), dtype=jnp.float32) * 0.1
               for i in range(len(filter_sizes))]
    fc1_w = jax.random.normal(keys[8], (F * len(filter_sizes), D1), dtype=jnp.float32) * 0.2
    fc1_b = jax.random.normal(keys[9], (D1,), dtype=jnp.float32) * 0.1
    fc2_w = jax.random.normal(keys[10], (D1, L), dtype=jnp.float32) * 0.2
    fc2_b = jax.random.normal(keys[11], (L,), dtype=jnp.float32) * 0.1

    out = jax.block_until_ready(classifier_head_forward(
        x, w_att, conv_ws, conv_bs, filter_sizes, fc1_w, fc1_b, fc2_w, fc2_b))
    ref = classifier_head_reference(
        x, w_att, conv_ws, conv_bs, filter_sizes, fc1_w, fc1_b, fc2_w, fc2_b)
    assert out.shape == (B, L)
    # tolerance covers the EUP approx-reciprocal softmax and MXU f32 pass precision
    assert jnp.allclose(out, ref, atol=2e-2, rtol=2e-2), "mismatch vs reference"

    # Second config: explicit batch tiling (grid > 1) and a non-128 hidden size.
    B2, S2, H2 = 16, 8, 64
    x2 = jax.random.normal(keys[0], (B2, S2, H2), dtype=jnp.float32)
    w_att2 = jax.random.uniform(keys[1], (H2,), jnp.float32, -0.1, 0.1)
    conv_ws2 = [jax.random.normal(keys[2 + i], (F, H2, f), dtype=jnp.float32) * 0.1
                for i, f in enumerate(filter_sizes)]
    out2 = jax.block_until_ready(classifier_head_forward(
        x2, w_att2, conv_ws2, conv_bs, filter_sizes, fc1_w, fc1_b, fc2_w, fc2_b, tb=8))
    ref2 = classifier_head_reference(
        x2, w_att2, conv_ws2, conv_bs, filter_sizes, fc1_w, fc1_b, fc2_w, fc2_b)
    assert out2.shape == (B2, L)
    assert jnp.allclose(out2, ref2, atol=2e-2, rtol=2e-2), "mismatch vs reference (tiled)"

    print("KERNEL_OK")
</pallas_src>

<mosaic_0001>
module attributes {stable_mosaic.version = 11 : i64} {
  func.func @kernel(%arg0: i32, %arg1: memref<8x16x128xf32, #tpu.memory_space<vmem>>, %arg2: memref<1x128xf32, #tpu.memory_space<vmem>>, %arg3: memref<1x128x32xf32, #tpu.memory_space<vmem>>, %arg4: memref<1x32xf32, #tpu.memory_space<vmem>>, %arg5: memref<2x128x32xf32, #tpu.memory_space<vmem>>, %arg6: memref<1x32xf32, #tpu.memory_space<vmem>>, %arg7: memref<1x128x32xf32, #tpu.memory_space<vmem>>, %arg8: memref<1x32xf32, #tpu.memory_space<vmem>>, %arg9: memref<32x128xf32, #tpu.memory_space<vmem>>, %arg10: memref<32x128xf32, #tpu.memory_space<vmem>>, %arg11: memref<32x128xf32, #tpu.memory_space<vmem>>, %arg12: memref<1x128xf32, #tpu.memory_space<vmem>>, %arg13: memref<128x2xf32, #tpu.memory_space<vmem>>, %arg14: memref<1x2xf32, #tpu.memory_space<vmem>>, %arg15: memref<8x2xf32, #tpu.memory_space<vmem>>) attributes {dimension_semantics = [#tpu.dimension_semantics<parallel>], iteration_bounds = array<i64: 1>, scalar_prefetch = 0 : i64, scratch_operands = 0 : i64, tpu.core_type = #tpu.core_type<tc>, window_params = [{transform_indices = @transform_0, window_bounds = array<i64: 8, 16, 128>}, {pipeline_mode = #tpu.pipeline_mode<synchronous>, transform_indices = @transform_1, window_bounds = array<i64: 1, 128>}, {pipeline_mode = #tpu.pipeline_mode<synchronous>, transform_indices = @transform_2, window_bounds = array<i64: 1, 128, 32>}, {pipeline_mode = #tpu.pipeline_mode<synchronous>, transform_indices = @transform_3, window_bounds = array<i64: 1, 32>}, {pipeline_mode = #tpu.pipeline_mode<synchronous>, transform_indices = @transform_4, window_bounds = array<i64: 2, 128, 32>}, {pipeline_mode = #tpu.pipeline_mode<synchronous>, transform_indices = @transform_5, window_bounds = array<i64: 1, 32>}, {pipeline_mode = #tpu.pipeline_mode<synchronous>, transform_indices = @transform_6, window_bounds = array<i64: 1, 128, 32>}, {pipeline_mode = #tpu.pipeline_mode<synchronous>, transform_indices = @transform_7, window_bounds = array<i64: 1, 32>}, {pipeline_mode = #tpu.pipeline_mode<synchronous>, transform_indices = @transform_8, window_bounds = array<i64: 32, 128>}, {pipeline_mode = #tpu.pipeline_mode<synchronous>, transform_indices = @transform_9, window_bounds = array<i64: 32, 128>}, {pipeline_mode = #tpu.pipeline_mode<synchronous>, transform_indices = @transform_10, window_bounds = array<i64: 32, 128>}, {pipeline_mode = #tpu.pipeline_mode<synchronous>, transform_indices = @transform_11, window_bounds = array<i64: 1, 128>}, {pipeline_mode = #tpu.pipeline_mode<synchronous>, transform_indices = @transform_12, window_bounds = array<i64: 128, 2>}, {pipeline_mode = #tpu.pipeline_mode<synchronous>, transform_indices = @transform_13, window_bounds = array<i64: 1, 2>}, {transform_indices = @transform_14, window_bounds = array<i64: 8, 2>}]} {
    %c0 = arith.constant 0 : index
    %c0_0 = arith.constant 0 : index
    %c0_1 = arith.constant 0 : index
    %0 = vector.load %arg1[%c0, %c0_0, %c0_1] : memref<8x16x128xf32, #tpu.memory_space<vmem>>, vector<8x16x128xf32>
    %c0_2 = arith.constant 0 : index
    %c0_3 = arith.constant 0 : index
    %1 = vector.load %arg2[%c0_2, %c0_3] : memref<1x128xf32, #tpu.memory_space<vmem>>, vector<1x128xf32>
    %2 = vector.shape_cast %1 : vector<1x128xf32> to vector<1x1x128xf32>
    %3 = vector.broadcast %2 : vector<1x1x128xf32> to vector<8x16x128xf32>
    %4 = arith.mulf %0, %3 : vector<8x16x128xf32>
    %cst = arith.constant dense<0.000000e+00> : vector<8x16xf32>
    %5 = vector.multi_reduction <add>, %4, %cst [2] : vector<8x16x128xf32> to vector<8x16xf32>
    %cst_4 = arith.constant dense<0xFF800000> : vector<8xf32>
    %6 = vector.multi_reduction <maximumf>, %5, %cst_4 [1] : vector<8x16xf32> to vector<8xf32>
    %7 = vector.shape_cast %6 : vector<8xf32> to vector<8x1xf32>
    %8 = vector.broadcast %7 : vector<8x1xf32> to vector<8x16xf32>
    %9 = arith.subf %5, %8 : vector<8x16xf32>
    %10 = math.exp %9 : vector<8x16xf32>
    %cst_5 = arith.constant dense<0.000000e+00> : vector<8xf32>
    %11 = vector.multi_reduction <add>, %10, %cst_5 [1] : vector<8x16xf32> to vector<8xf32>
    %12 = vector.shape_cast %11 : vector<8xf32> to vector<8x1xf32>
    %13 = tpu.reciprocal %12 {approx = true} : vector<8x1xf32> -> vector<8x1xf32>
    %14 = vector.broadcast %13 : vector<8x1xf32> to vector<8x16xf32>
    %15 = arith.mulf %10, %14 : vector<8x16xf32>
    %16 = vector.shape_cast %15 : vector<8x16xf32> to vector<8x16x1xf32>
    %17 = vector.broadcast %16 : vector<8x16x1xf32> to vector<8x16x128xf32>
    %18 = arith.mulf %0, %17 : vector<8x16x128xf32>
    %cst_6 = arith.constant dense<0.000000e+00> : vector<8x128xf32>
    %19 = vector.multi_reduction <add>, %18, %cst_6 [1] : vector<8x16x128xf32> to vector<8x128xf32>
    %c0_7 = arith.constant 0 : index
    %c0_8 = arith.constant 0 : index
    %20 = vector.load %arg4[%c0_7, %c0_8] : memref<1x32xf32, #tpu.memory_space<vmem>>, vector<1x32xf32>
    %c0_9 = arith.constant 0 : index
    %c0_10 = arith.constant 0 : index
    %c0_11 = arith.constant 0 : index
    %21 = vector.load %arg3[%c0_9, %c0_10, %c0_11] : memref<1x128x32xf32, #tpu.memory_space<vmem>>, vector<1x128x32xf32>
    %22 = vector.shape_cast %21 : vector<1x128x32xf32> to vector<128x32xf32>
    %cst_12 = arith.constant dense<0.000000e+00> : vector<8x32xf32>
    %23 = tpu.matmul %19, %22, %cst_12 {dimension_numbers = #tpu.dot_dimension_numbers<[1], [0], [0], [1], [0, 0, 1, 1], [], []>} : vector<8x128xf32>, vector<128x32xf32>, vector<8x32xf32> -> vector<8x32xf32>
    %24 = vector.broadcast %20 : vector<1x32xf32> to vector<8x32xf32>
    %25 = arith.addf %23, %24 : vector<8x32xf32>
    %cst_13 = arith.constant 0.000000e+00 : f32
    %26 = vector.broadcast %cst_13 : f32 to vector<8x32xf32>
    %27 = arith.maximumf %25, %26 : vector<8x32xf32>
    %c0_14 = arith.constant 0 : index
    %c0_15 = arith.constant 0 : index
    %28 = vector.load %arg9[%c0_14, %c0_15] : memref<32x128xf32, #tpu.memory_space<vmem>>, vector<32x128xf32>
    %cst_16 = arith.constant dense<0.000000e+00> : vector<8x128xf32>
    %29 = tpu.matmul %27, %28, %cst_16 {dimension_numbers = #tpu.dot_dimension_numbers<[1], [0], [0], [1], [0, 0, 1, 1], [], []>} : vector<8x32xf32>, vector<32x128xf32>, vector<8x128xf32> -> vector<8x128xf32>
    %c0_17 = arith.constant 0 : index
    %c0_18 = arith.constant 0 : index
    %30 = vector.load %arg6[%c0_17, %c0_18] : memref<1x32xf32, #tpu.memory_space<vmem>>, vector<1x32xf32>
    %c0_19 = arith.constant 0 : index
    %c0_20 = arith.constant 0 : index
    %c0_21 = arith.constant 0 : index
    %31 = vector.load %arg5[%c0_19, %c0_20, %c0_21] : memref<2x128x32xf32, #tpu.memory_space<vmem>>, vector<1x128x32xf32>
    %32 = vector.shape_cast %31 : vector<1x128x32xf32> to vector<128x32xf32>
    %cst_22 = arith.constant dense<0.000000e+00> : vector<8x32xf32>
    %33 = tpu.matmul %19, %32, %cst_22 {dimension_numbers = #tpu.dot_dimension_numbers<[1], [0], [0], [1], [0, 0, 1, 1], [], []>} : vector<8x128xf32>, vector<128x32xf32>, vector<8x32xf32> -> vector<8x32xf32>
    %34 = vector.broadcast %30 : vector<1x32xf32> to vector<8x32xf32>
    %35 = arith.addf %33, %34 : vector<8x32xf32>
    %c1 = arith.constant 1 : index
    %c0_23 = arith.constant 0 : index
    %c0_24 = arith.constant 0 : index
    %36 = vector.load %arg5[%c1, %c0_23, %c0_24] : memref<2x128x32xf32, #tpu.memory_space<vmem>>, vector<1x128x32xf32>
    %37 = vector.shape_cast %36 : vector<1x128x32xf32> to vector<128x32xf32>
    %cst_25 = arith.constant dense<0.000000e+00> : vector<8x32xf32>
    %38 = tpu.matmul %19, %37, %cst_25 {dimension_numbers = #tpu.dot_dimension_numbers<[1], [0], [0], [1], [0, 0, 1, 1], [], []>} : vector<8x128xf32>, vector<128x32xf32>, vector<8x32xf32> -> vector<8x32xf32>
    %39 = vector.broadcast %30 : vector<1x32xf32> to vector<8x32xf32>
    %40 = arith.addf %38, %39 : vector<8x32xf32>
    %41 = arith.maximumf %35, %40 : vector<8x32xf32>
    %cst_26 = arith.constant 0.000000e+00 : f32
    %42 = vector.broadcast %cst_26 : f32 to vector<8x32xf32>
    %43 = arith.maximumf %41, %42 : vector<8x32xf32>
    %c0_27 = arith.constant 0 : index
    %c0_28 = arith.constant 0 : index
    %44 = vector.load %arg10[%c0_27, %c0_28] : memref<32x128xf32, #tpu.memory_space<vmem>>, vector<32x128xf32>
    %cst_29 = arith.constant dense<0.000000e+00> : vector<8x128xf32>
    %45 = tpu.matmul %43, %44, %cst_29 {dimension_numbers = #tpu.dot_dimension_numbers<[1], [0], [0], [1], [0, 0, 1, 1], [], []>} : vector<8x32xf32>, vector<32x128xf32>, vector<8x128xf32> -> vector<8x128xf32>
    %46 = arith.addf %29, %45 : vector<8x128xf32>
    %c0_30 = arith.constant 0 : index
    %c0_31 = arith.constant 0 : index
    %47 = vector.load %arg8[%c0_30, %c0_31] : memref<1x32xf32, #tpu.memory_space<vmem>>, vector<1x32xf32>
    %c0_32 = arith.constant 0 : index
    %c0_33 = arith.constant 0 : index
    %c0_34 = arith.constant 0 : index
    %48 = vector.load %arg7[%c0_32, %c0_33, %c0_34] : memref<1x128x32xf32, #tpu.memory_space<vmem>>, vector<1x128x32xf32>
    %49 = vector.shape_cast %48 : vector<1x128x32xf32> to vector<128x32xf32>
    %cst_35 = arith.constant dense<0.000000e+00> : vector<8x32xf32>
    %50 = tpu.matmul %19, %49, %cst_35 {dimension_numbers = #tpu.dot_dimension_numbers<[1], [0], [0], [1], [0, 0, 1, 1], [], []>} : vector<8x128xf32>, vector<128x32xf32>, vector<8x32xf32> -> vector<8x32xf32>
    %51 = vector.broadcast %47 : vector<1x32xf32> to vector<8x32xf32>
    %52 = arith.addf %50, %51 : vector<8x32xf32>
    %cst_36 = arith.constant 0.000000e+00 : f32
    %53 = vector.broadcast %cst_36 : f32 to vector<8x32xf32>
    %54 = arith.maximumf %52, %53 : vector<8x32xf32>
    %c0_37 = arith.constant 0 : index
    %c0_38 = arith.constant 0 : index
    %55 = vector.load %arg11[%c0_37, %c0_38] : memref<32x128xf32, #tpu.memory_space<vmem>>, vector<32x128xf32>
    %cst_39 = arith.constant dense<0.000000e+00> : vector<8x128xf32>
    %56 = tpu.matmul %54, %55, %cst_39 {dimension_numbers = #tpu.dot_dimension_numbers<[1], [0], [0], [1], [0, 0, 1, 1], [], []>} : vector<8x32xf32>, vector<32x128xf32>, vector<8x128xf32> -> vector<8x128xf32>
    %57 = arith.addf %46, %56 : vector<8x128xf32>
    %c0_40 = arith.constant 0 : index
    %c0_41 = arith.constant 0 : index
    %58 = vector.load %arg12[%c0_40, %c0_41] : memref<1x128xf32, #tpu.memory_space<vmem>>, vector<1x128xf32>
    %59 = vector.broadcast %58 : vector<1x128xf32> to vector<8x128xf32>
    %60 = arith.addf %57, %59 : vector<8x128xf32>
    %61 = math.tanh %60 : vector<8x128xf32>
    %c0_42 = arith.constant 0 : index
    %c0_43 = arith.constant 0 : index
    %62 = vector.load %arg13[%c0_42, %c0_43] : memref<128x2xf32, #tpu.memory_space<vmem>>, vector<128x2xf32>
    %cst_44 = arith.constant dense<0.000000e+00> : vector<8x2xf32>
    %63 = tpu.matmul %61, %62, %cst_44 {dimension_numbers = #tpu.dot_dimension_numbers<[1], [0], [0], [1], [0, 0, 1, 1], [], []>} : vector<8x128xf32>, vector<128x2xf32>, vector<8x2xf32> -> vector<8x2xf32>
    %c0_45 = arith.constant 0 : index
    %c0_46 = arith.constant 0 : index
    %64 = vector.load %arg14[%c0_45, %c0_46] : memref<1x2xf32, #tpu.memory_space<vmem>>, vector<1x2xf32>
    %65 = vector.broadcast %64 : vector<1x2xf32> to vector<8x2xf32>
    %66 = arith.addf %63, %65 : vector<8x2xf32>
    %c0_47 = arith.constant 0 : index
    %c0_48 = arith.constant 0 : index
    %67 = vector.load %arg15[%c0_47, %c0_48] : memref<8x2xf32, #tpu.memory_space<vmem>>, vector<8x2xf32>
    tpu.vector_store %arg15[%c0_47, %c0_48], %66 {strides = array<i32>} : memref<8x2xf32, #tpu.memory_space<vmem>>, vector<8x2xf32>,
    return
  }
  func.func @transform_0(%arg0: i32) -> (i32, i32, i32) {
    %c0_i32 = arith.constant 0 : i32
    %c0_i32_0 = arith.constant 0 : i32
    %c0_i32_1 = arith.constant 0 : i32
    return %arg0, %c0_i32, %c0_i32_0 : i32, i32, i32
  }
  func.func @transform_1(%arg0: i32) -> (i32, i32) {
    %c0_i32 = arith.constant 0 : i32
    %c0_i32_0 = arith.constant 0 : i32
    %c0_i32_1 = arith.constant 0 : i32
    return %c0_i32, %c0_i32_0 : i32, i32
  }
  func.func @transform_2(%arg0: i32) -> (i32, i32, i32) {
    %c0_i32 = arith.constant 0 : i32
    %c0_i32_0 = arith.constant 0 : i32
    %c0_i32_1 = arith.constant 0 : i32
    %c0_i32_2 = arith.constant 0 : i32
    return %c0_i32, %c0_i32_0, %c0_i32_1 : i32, i32, i32
  }
  func.func @transform_3(%arg0: i32) -> (i32, i32) {
    %c0_i32 = arith.constant 0 : i32
    %c0_i32_0 = arith.constant 0 : i32
    %c0_i32_1 = arith.constant 0 : i32
    return %c0_i32, %c0_i32_0 : i32, i32
  }
  func.func @transform_4(%arg0: i32) -> (i32, i32, i32) {
    %c0_i32 = arith.constant 0 : i32
    %c0_i32_0 = arith.constant 0 : i32
    %c0_i32_1 = arith.constant 0 : i32
    %c0_i32_2 = arith.constant 0 : i32
    return %c0_i32, %c0_i32_0, %c0_i32_1 : i32, i32, i32
  }
  func.func @transform_5(%arg0: i32) -> (i32, i32) {
    %c0_i32 = arith.constant 0 : i32
    %c0_i32_0 = arith.constant 0 : i32
    %c0_i32_1 = arith.constant 0 : i32
    return %c0_i32, %c0_i32_0 : i32, i32
  }
  func.func @transform_6(%arg0: i32) -> (i32, i32, i32) {
    %c0_i32 = arith.constant 0 : i32
    %c0_i32_0 = arith.constant 0 : i32
    %c0_i32_1 = arith.constant 0 : i32
    %c0_i32_2 = arith.constant 0 : i32
    return %c0_i32, %c0_i32_0, %c0_i32_1 : i32, i32, i32
  }
  func.func @transform_7(%arg0: i32) -> (i32, i32) {
    %c0_i32 = arith.constant 0 : i32
    %c0_i32_0 = arith.constant 0 : i32
    %c0_i32_1 = arith.constant 0 : i32
    return %c0_i32, %c0_i32_0 : i32, i32
  }
  func.func @transform_8(%arg0: i32) -> (i32, i32) {
    %c0_i32 = arith.constant 0 : i32
    %c0_i32_0 = arith.constant 0 : i32
    %c0_i32_1 = arith.constant 0 : i32
    return %c0_i32, %c0_i32_0 : i32, i32
  }
  func.func @transform_9(%arg0: i32) -> (i32, i32) {
    %c0_i32 = arith.constant 0 : i32
    %c0_i32_0 = arith.constant 0 : i32
    %c0_i32_1 = arith.constant 0 : i32
    return %c0_i32, %c0_i32_0 : i32, i32
  }
  func.func @transform_10(%arg0: i32) -> (i32, i32) {
    %c0_i32 = arith.constant 0 : i32
    %c0_i32_0 = arith.constant 0 : i32
    %c0_i32_1 = arith.constant 0 : i32
    return %c0_i32, %c0_i32_0 : i32, i32
  }
  func.func @transform_11(%arg0: i32) -> (i32, i32) {
    %c0_i32 = arith.constant 0 : i32
    %c0_i32_0 = arith.constant 0 : i32
    %c0_i32_1 = arith.constant 0 : i32
    return %c0_i32, %c0_i32_0 : i32, i32
  }
  func.func @transform_12(%arg0: i32) -> (i32, i32) {
    %c0_i32 = arith.constant 0 : i32
    %c0_i32_0 = arith.constant 0 : i32
    %c0_i32_1 = arith.constant 0 : i32
    return %c0_i32, %c0_i32_0 : i32, i32
  }
  func.func @transform_13(%arg0: i32) -> (i32, i32) {
    %c0_i32 = arith.constant 0 : i32
    %c0_i32_0 = arith.constant 0 : i32
    %c0_i32_1 = arith.constant 0 : i32
    return %c0_i32, %c0_i32_0 : i32, i32
  }
  func.func @transform_14(%arg0: i32) -> (i32, i32) {
    %c0_i32 = arith.constant 0 : i32
    %c0_i32_0 = arith.constant 0 : i32
    return %arg0, %c0_i32 : i32, i32
  }
}

</mosaic_0001>

<llo_original>
// kernel: tpu_custom_call.1
$region0: #{tpu_custom_call.1}
  #allocation0 [shape = 'u32[]', space=smem, size = 0x4, offset = 0x4, fixed_abs, tag = 'smem constant byte address 0x4 - core index']
  #allocation1 [shape = 'u32[144,128]{1,0:T(1,128)}', space=vmem, size = 0x12000, scoped, tag = 'internal scratch']
  %s0 = inlined_call_operand.vmem [shape: f32[8,16,128], index: 0, kind: input, shape index: {}]
  %s1 = inlined_call_operand.vmem [shape: f32[1,128], index: 1, kind: input, shape index: {}]
  %s2 = inlined_call_operand.vmem [shape: f32[1,128,32], index: 2, kind: input, shape index: {}]
  %s3 = inlined_call_operand.vmem [shape: f32[1,32], index: 3, kind: input, shape index: {}]
  %s4 = inlined_call_operand.vmem [shape: f32[2,128,32], index: 4, kind: input, shape index: {}]
  %s5 = inlined_call_operand.vmem [shape: f32[1,32], index: 5, kind: input, shape index: {}]
  %s6 = inlined_call_operand.vmem [shape: f32[1,128,32], index: 6, kind: input, shape index: {}]
  %s7 = inlined_call_operand.vmem [shape: f32[1,32], index: 7, kind: input, shape index: {}]
  %s8 = inlined_call_operand.vmem [shape: f32[32,128], index: 8, kind: input, shape index: {}]
  %s9 = inlined_call_operand.vmem [shape: f32[32,128], index: 9, kind: input, shape index: {}]
  %s10 = inlined_call_operand.vmem [shape: f32[32,128], index: 10, kind: input, shape index: {}]
  %s11 = inlined_call_operand.vmem [shape: f32[1,128], index: 11, kind: input, shape index: {}]
  %s12 = inlined_call_operand.vmem [shape: f32[128,2], index: 12, kind: input, shape index: {}]
  %s13 = inlined_call_operand.vmem [shape: f32[1,2], index: 13, kind: input, shape index: {}]
  %s14 = inlined_call_operand.vmem [shape: f32[8,2], index: 14, kind: output, shape index: {}]
  %s15 = sld [smem:[#allocation0]]
  $region66: #{tpu_custom_call.1} parent=0
    _
  %s17 = ssub.s32 1, %s15
  %s18 = scalar_select 0, %s17, %s15
  // Predicated region
  $region2: #{tpu_custom_call.1} parent=0 // pred_check
    _
  $region3: #{tpu_custom_call.1} parent=0 // pred_check_branch
    %20 = sbr.rel (0) target = $region5
  $region4: #{tpu_custom_call.1} parent=0 // pred_region
    _
  $region5: #{tpu_custom_call.1} parent=0 // pred_fallthru
    _
  // Predicated region
  $region6: #{tpu_custom_call.1} parent=0 // pred_check
    _
  $region7: #{tpu_custom_call.1} parent=0 // pred_check_branch
    %22 = sbr.rel (0) target = $region9
  $region8: #{tpu_custom_call.1} parent=0 // pred_region
    _
  $region9: #{tpu_custom_call.1} parent=0 // pred_fallthru
    _
  // Predicated region
  $region10: #{tpu_custom_call.1} parent=0 // pred_check
    _
  $region11: #{tpu_custom_call.1} parent=0 // pred_check_branch
    %24 = sbr.rel (0) target = $region13
  $region12: #{tpu_custom_call.1} parent=0 // pred_region
    _
  $region13: #{tpu_custom_call.1} parent=0 // pred_fallthru
    _
  // Predicated region
  $region14: #{tpu_custom_call.1} parent=0 // pred_check
    _
  $region15: #{tpu_custom_call.1} parent=0 // pred_check_branch
    %26 = sbr.rel (0) target = $region17
  $region16: #{tpu_custom_call.1} parent=0 // pred_region
    _
  $region17: #{tpu_custom_call.1} parent=0 // pred_fallthru
    _
  // Predicated region
  $region18: #{tpu_custom_call.1} parent=0 // pred_check
    _
  $region19: #{tpu_custom_call.1} parent=0 // pred_check_branch
    %28 = sbr.rel (0) target = $region21
  $region20: #{tpu_custom_call.1} parent=0 // pred_region
    _
  $region21: #{tpu_custom_call.1} parent=0 // pred_fallthru
    _
  // Predicated region
  $region22: #{tpu_custom_call.1} parent=0 // pred_check
    _
  $region23: #{tpu_custom_call.1} parent=0 // pred_check_branch
    %30 = sbr.rel (0) target = $region25
  $region24: #{tpu_custom_call.1} parent=0 // pred_region
    _
  $region25: #{tpu_custom_call.1} parent=0 // pred_fallthru
    _
  // Predicated region
  $region26: #{tpu_custom_call.1} parent=0 // pred_check
    _
  $region27: #{tpu_custom_call.1} parent=0 // pred_check_branch
    %32 = sbr.rel (0) target = $region29
  $region28: #{tpu_custom_call.1} parent=0 // pred_region
    _
  $region29: #{tpu_custom_call.1} parent=0 // pred_fallthru
    _
  // Predicated region
  $region30: #{tpu_custom_call.1} parent=0 // pred_check
    _
  $region31: #{tpu_custom_call.1} parent=0 // pred_check_branch
    %34 = sbr.rel (0) target = $region33
  $region32: #{tpu_custom_call.1} parent=0 // pred_region
    _
  $region33: #{tpu_custom_call.1} parent=0 // pred_fallthru
    _
  // Predicated region
  $region34: #{tpu_custom_call.1} parent=0 // pred_check
    _
  $region35: #{tpu_custom_call.1} parent=0 // pred_check_branch
    %36 = sbr.rel (0) target = $region37
  $region36: #{tpu_custom_call.1} parent=0 // pred_region
    _
  $region37: #{tpu_custom_call.1} parent=0 // pred_fallthru
    _
  // Predicated region
  $region38: #{tpu_custom_call.1} parent=0 // pred_check
    _
  $region39: #{tpu_custom_call.1} parent=0 // pred_check_branch
    %38 = sbr.rel (0) target = $region41
  $region40: #{tpu_custom_call.1} parent=0 // pred_region
    _
  $region41: #{tpu_custom_call.1} parent=0 // pred_fallthru
    _
  // Predicated region
  $region42: #{tpu_custom_call.1} parent=0 // pred_check
    _
  $region43: #{tpu_custom_call.1} parent=0 // pred_check_branch
    %40 = sbr.rel (0) target = $region45
  $region44: #{tpu_custom_call.1} parent=0 // pred_region
    _
  $region45: #{tpu_custom_call.1} parent=0 // pred_fallthru
    _
  // Predicated region
  $region46: #{tpu_custom_call.1} parent=0 // pred_check
    _
  $region47: #{tpu_custom_call.1} parent=0 // pred_check_branch
    %42 = sbr.rel (0) target = $region49
  $region48: #{tpu_custom_call.1} parent=0 // pred_region
    _
  $region49: #{tpu_custom_call.1} parent=0 // pred_fallthru
    _
  // Predicated region
  $region50: #{tpu_custom_call.1} parent=0 // pred_check
    _
  $region51: #{tpu_custom_call.1} parent=0 // pred_check_branch
    %44 = sbr.rel (0) target = $region53
  $region52: #{tpu_custom_call.1} parent=0 // pred_region
    _
  $region53: #{tpu_custom_call.1} parent=0 // pred_fallthru
    _
  // Predicated region
  $region54: #{tpu_custom_call.1} parent=0 // pred_check
    _
  $region55: #{tpu_custom_call.1} parent=0 // pred_check_branch
    %46 = sbr.rel (0) target = $region57
  $region56: #{tpu_custom_call.1} parent=0 // pred_region
    _
  $region57: #{tpu_custom_call.1} parent=0 // pred_fallthru
    _
  %v47 = vld [vmem:[%s0] sm:$0xff]
  %v48 = vld [vmem:[%s0 + $0x8] sm:$0xff]
  %v49 = vld [vmem:[%s0 + $0x10] sm:$0xff]
  %v50 = vld [vmem:[%s0 + $0x18] sm:$0xff]
  %v51 = vld [vmem:[%s0 + $0x20] sm:$0xff]
  %v52 = vld [vmem:[%s0 + $0x28] sm:$0xff]
  %v53 = vld [vmem:[%s0 + $0x30] sm:$0xff]
  %v54 = vld [vmem:[%s0 + $0x38] sm:$0xff]
  %v55 = vld [vmem:[%s0 + $0x40] sm:$0xff]
  %v56 = vld [vmem:[%s0 + $0x48] sm:$0xff]
  %v57 = vld [vmem:[%s0 + $0x50] sm:$0xff]
  %v58 = vld [vmem:[%s0 + $0x58] sm:$0xff]
  %v59 = vld [vmem:[%s0 + $0x60] sm:$0xff]
  %v60 = vld [vmem:[%s0 + $0x68] sm:$0xff]
  %v61 = vld [vmem:[%s0 + $0x70] sm:$0xff]
  %v62 = vld [vmem:[%s0 + $0x78] sm:$0xff]
  %v63 = vld [vmem:[%s1] sm:$0x1]
  %v65 = vlaneseq
  %v66 = vshrl.u32 %v65, 7
  %v67 = vsub.s32 0, %v66
  %v68 = vrot.slane %v63, %v67
  %v70 = vmul.f32 %v47, %v68
  %v71 = vmul.f32 %v48, %v68
  %v72 = vmul.f32 %v49, %v68
  %v73 = vmul.f32 %v50, %v68
  %v74 = vmul.f32 %v51, %v68
  %v75 = vmul.f32 %v52, %v68
  %v76 = vmul.f32 %v53, %v68
  %v77 = vmul.f32 %v54, %v68
  %v78 = vmul.f32 %v55, %v68
  %v79 = vmul.f32 %v56, %v68
  %v80 = vmul.f32 %v57, %v68
  %v81 = vmul.f32 %v58, %v68
  %v82 = vmul.f32 %v59, %v68
  %v83 = vmul.f32 %v60, %v68
  %v84 = vmul.f32 %v61, %v68
  %v85 = vmul.f32 %v62, %v68
  %86 = vadd.xlane.f32.xlu0 %v70
  %v87 = vpop.xlane.xlu0 %86
  %88 = vadd.xlane.f32.xlu0 %v71
  %v89 = vpop.xlane.xlu0 %88
  %90 = vadd.xlane.f32.xlu0 %v72
  %v91 = vpop.xlane.xlu0 %90
  %92 = vadd.xlane.f32.xlu0 %v73
  %v93 = vpop.xlane.xlu0 %92
  %94 = vadd.xlane.f32.xlu0 %v74
  %v95 = vpop.xlane.xlu0 %94
  %96 = vadd.xlane.f32.xlu0 %v75
  %v97 = vpop.xlane.xlu0 %96
  %98 = vadd.xlane.f32.xlu0 %v76
  %v99 = vpop.xlane.xlu0 %98
  %100 = vadd.xlane.f32.xlu0 %v77
  %v101 = vpop.xlane.xlu0 %100
  %102 = vadd.xlane.f32.xlu0 %v78
  %v103 = vpop.xlane.xlu0 %102
  %104 = vadd.xlane.f32.xlu0 %v79
  %v105 = vpop.xlane.xlu0 %104
  %106 = vadd.xlane.f32.xlu0 %v80
  %v107 = vpop.xlane.xlu0 %106
  %108 = vadd.xlane.f32.xlu0 %v81
  %v109 = vpop.xlane.xlu0 %108
  %110 = vadd.xlane.f32.xlu0 %v82
  %v111 = vpop.xlane.xlu0 %110
  %112 = vadd.xlane.f32.xlu0 %v83
  %v113 = vpop.xlane.xlu0 %112
  %114 = vadd.xlane.f32.xlu0 %v84
  %v115 = vpop.xlane.xlu0 %114
  %116 = vadd.xlane.f32.xlu0 %v85
  %v117 = vpop.xlane.xlu0 %116
  %v134 = vlaneseq
  %v135 = vand.u32 %v134, 127
  %v136 = vlaneseq
  %v137 = vshrl.u32 %v136, 7
  %v138 = vsub.s32 %v135, %v137
  %v139 = vrot.slane %v87, %v138
  %v140 = vadd.s32 %v135, 4294967288
  %v141 = vlaneseq
  %v142 = vshrl.u32 %v141, 7
  %v143 = vsub.s32 %v140, %v142
  %v144 = vrot.slane %v89, %v143
  %vm145 = vcmask 130112
  %v146 = vsel %vm145, %v144, %v139
  %v147 = vlaneseq
  %v148 = vshrl.u32 %v147, 7
  %v149 = vsub.s32 %v135, %v148
  %v150 = vrot.slane %v91, %v149
  %v151 = vlaneseq
  %v152 = vshrl.u32 %v151, 7
  %v153 = vsub.s32 %v140, %v152
  %v154 = vrot.slane %v93, %v153
  %v155 = vsel %vm145, %v154, %v150
  %v156 = vlaneseq
  %v157 = vshrl.u32 %v156, 7
  %v158 = vsub.s32 %v135, %v157
  %v159 = vrot.slane %v95, %v158
  %v160 = vlaneseq
  %v161 = vshrl.u32 %v160, 7
  %v162 = vsub.s32 %v140, %v161
  %v163 = vrot.slane %v97, %v162
  %v164 = vsel %vm145, %v163, %v159
  %v165 = vlaneseq
  %v166 = vshrl.u32 %v165, 7
  %v167 = vsub.s32 %v135, %v166
  %v168 = vrot.slane %v99, %v167
  %v169 = vlaneseq
  %v170 = vshrl.u32 %v169, 7
  %v171 = vsub.s32 %v140, %v170
  %v172 = vrot.slane %v101, %v171
  %v173 = vsel %vm145, %v172, %v168
  %v174 = vlaneseq
  %v175 = vshrl.u32 %v174, 7
  %v176 = vsub.s32 %v135, %v175
  %v177 = vrot.slane %v103, %v176
  %v178 = vlaneseq
  %v179 = vshrl.u32 %v178, 7
  %v180 = vsub.s32 %v140, %v179
  %v181 = vrot.slane %v105, %v180
  %v182 = vsel %vm145, %v181, %v177
  %v183 = vlaneseq
  %v184 = vshrl.u32 %v183, 7
  %v185 = vsub.s32 %v135, %v184
  %v186 = vrot.slane %v107, %v185
  %v187 = vlaneseq
  %v188 = vshrl.u32 %v187, 7
  %v189 = vsub.s32 %v140, %v188
  %v190 = vrot.slane %v109, %v189
  %v191 = vsel %vm145, %v190, %v186
  %v192 = vlaneseq
  %v193 = vshrl.u32 %v192, 7
  %v194 = vsub.s32 %v135, %v193
  %v195 = vrot.slane %v111, %v194
  %v196 = vlaneseq
  %v197 = vshrl.u32 %v196, 7
  %v198 = vsub.s32 %v140, %v197
  %v199 = vrot.slane %v113, %v198
  %v200 = vsel %vm145, %v199, %v195
  %v201 = vlaneseq
  %v202 = vshrl.u32 %v201, 7
  %v203 = vsub.s32 %v135, %v202
  %v204 = vrot.slane %v115, %v203
  %v205 = vlaneseq
  %v206 = vshrl.u32 %v205, 7
  %v207 = vsub.s32 %v140, %v206
  %v208 = vrot.slane %v117, %v207
  %v209 = vsel %vm145, %v208, %v204
  %vm210 = vcmask 1041409
  %v211 = vsel %vm210, %v155, %v146
  %vm212 = vcmask 1042434
  %v213 = vsel %vm212, %v164, %v211
  %vm214 = vcmask 1043459
  %v215 = vsel %vm214, %v173, %v213
  %vm216 = vcmask 1044484
  %v217 = vsel %vm216, %v182, %v215
  %vm218 = vcmask 1045509
  %v219 = vsel %vm218, %v191, %v217
  %vm220 = vcmask 1046534
  %v221 = vsel %vm220, %v200, %v219
  %vm222 = vcmask 1047559
  %v223 = vsel %vm222, %v209, %v221
  %vm225 = vcmask 130048
  %v226 = vsel %vm225, %v223, -inf
  %227 = vmax.xlane.f32.xlu0 %v226
  %v228 = vpop.xlane.xlu0 %227
  %v230 = vlaneseq
  %v231 = vshrl.u32 %v230, 7
  %v232 = vsub.s32 0, %v231
  %v233 = vrot.slane %v228, %v232
  %v234 = vlaneseq
  %v235 = vshrl.u32 %v234, 7
  %v236 = vsub.s32 1, %v235
  %v237 = vrot.slane %v228, %v236
  %v238 = vlaneseq
  %v239 = vshrl.u32 %v238, 7
  %v240 = vsub.s32 2, %v239
  %v241 = vrot.slane %v228, %v240
  %v242 = vlaneseq
  %v243 = vshrl.u32 %v242, 7
  %v244 = vsub.s32 3, %v243
  %v245 = vrot.slane %v228, %v244
  %v246 = vlaneseq
  %v247 = vshrl.u32 %v246, 7
  %v248 = vsub.s32 4, %v247
  %v249 = vrot.slane %v228, %v248
  %v250 = vlaneseq
  %v251 = vshrl.u32 %v250, 7
  %v252 = vsub.s32 5, %v251
  %v253 = vrot.slane %v228, %v252
  %v254 = vlaneseq
  %v255 = vshrl.u32 %v254, 7
  %v256 = vsub.s32 6, %v255
  %v257 = vrot.slane %v228, %v256
  %v258 = vlaneseq
  %v259 = vshrl.u32 %v258, 7
  %v260 = vsub.s32 7, %v259
  %v261 = vrot.slane %v228, %v260
  %v270 = vsub.f32 %v87, %v233
  %v271 = vsub.f32 %v89, %v233
  %v272 = vsub.f32 %v91, %v237
  %v273 = vsub.f32 %v93, %v237
  %v274 = vsub.f32 %v95, %v241
  %v275 = vsub.f32 %v97, %v241
  %v276 = vsub.f32 %v99, %v245
  %v277 = vsub.f32 %v101, %v245
  %v278 = vsub.f32 %v103, %v249
  %v279 = vsub.f32 %v105, %v249
  %v280 = vsub.f32 %v107, %v253
  %v281 = vsub.f32 %v109, %v253
  %v282 = vsub.f32 %v111, %v257
  %v283 = vsub.f32 %v113, %v257
  %v284 = vsub.f32 %v115, %v261
  %v285 = vsub.f32 %v117, %v261
  %v286 = vmul.f32 %v270, 1.442695
  %v287 = vpow.pop %v286
  %v288 = vmul.f32 %v271, 1.442695
  %v289 = vpow.pop %v288
  %v290 = vmul.f32 %v272, 1.442695
  %v291 = vpow.pop %v290
  %v292 = vmul.f32 %v273, 1.442695
  %v293 = vpow.pop %v292
  %v294 = vmul.f32 %v274, 1.442695
  %v295 = vpow.pop %v294
  %v296 = vmul.f32 %v275, 1.442695
  %v297 = vpow.pop %v296
  %v298 = vmul.f32 %v276, 1.442695
  %v299 = vpow.pop %v298
  %v300 = vmul.f32 %v277, 1.442695
  %v301 = vpow.pop %v300
  %v302 = vmul.f32 %v278, 1.442695
  %v303 = vpow.pop %v302
  %v304 = vmul.f32 %v279, 1.442695
  %v305 = vpow.pop %v304
  %v306 = vmul.f32 %v280, 1.442695
  %v307 = vpow.pop %v306
  %v308 = vmul.f32 %v281, 1.442695
  %v309 = vpow.pop %v308
  %v310 = vmul.f32 %v282, 1.442695
  %v311 = vpow.pop %v310
  %v312 = vmul.f32 %v283, 1.442695
  %v313 = vpow.pop %v312
  %v314 = vmul.f32 %v284, 1.442695
  %v315 = vpow.pop %v314
  %v316 = vmul.f32 %v285, 1.442695
  %v317 = vpow.pop %v316
  %334 = vset.pattern.permute.xlu0 0
  %335 = vperm.xlu0 %334, %v287
  %v336 = vpop.permute.xlu0 %335
  %337 = vset.pattern.permute.xlu0 0
  %338 = vperm.xlu0 %337, %v289
  %v339 = vpop.permute.xlu0 %338
  %340 = vset.pattern.permute.xlu0 0
  %341 = vperm.xlu0 %340, %v291
  %v342 = vpop.permute.xlu0 %341
  %343 = vset.pattern.permute.xlu0 0
  %344 = vperm.xlu0 %343, %v293
  %v345 = vpop.permute.xlu0 %344
  %346 = vset.pattern.permute.xlu0 0
  %347 = vperm.xlu0 %346, %v295
  %v348 = vpop.permute.xlu0 %347
  %349 = vset.pattern.permute.xlu0 0
  %350 = vperm.xlu0 %349, %v297
  %v351 = vpop.permute.xlu0 %350
  %352 = vset.pattern.permute.xlu0 0
  %353 = vperm.xlu0 %352, %v299
  %v354 = vpop.permute.xlu0 %353
  %355 = vset.pattern.permute.xlu0 0
  %356 = vperm.xlu0 %355, %v301
  %v357 = vpop.permute.xlu0 %356
  %358 = vset.pattern.permute.xlu0 0
  %359 = vperm.xlu0 %358, %v303
  %v360 = vpop.permute.xlu0 %359
  %361 = vset.pattern.permute.xlu0 0
  %362 = vperm.xlu0 %361, %v305
  %v363 = vpop.permute.xlu0 %362
  %364 = vset.pattern.permute.xlu0 0
  %365 = vperm.xlu0 %364, %v307
  %v366 = vpop.permute.xlu0 %365
  %367 = vset.pattern.permute.xlu0 0
  %368 = vperm.xlu0 %367, %v309
  %v369 = vpop.permute.xlu0 %368
  %370 = vset.pattern.permute.xlu0 0
  %371 = vperm.xlu0 %370, %v311
  %v372 = vpop.permute.xlu0 %371
  %373 = vset.pattern.permute.xlu0 0
  %374 = vperm.xlu0 %373, %v313
  %v375 = vpop.permute.xlu0 %374
  %376 = vset.pattern.permute.xlu0 0
  %377 = vperm.xlu0 %376, %v315
  %v378 = vpop.permute.xlu0 %377
  %379 = vset.pattern.permute.xlu0 0
  %380 = vperm.xlu0 %379, %v317
  %v381 = vpop.permute.xlu0 %380
  %v382 = vlaneseq
  %v383 = vshrl.u32 %v382, 7
  %v384 = vsub.s32 %v135, %v383
  %v385 = vrot.slane %v336, %v384
  %v386 = vlaneseq
  %v387 = vshrl.u32 %v386, 7
  %v388 = vsub.s32 %v140, %v387
  %v389 = vrot.slane %v339, %v388
  %v390 = vsel %vm145, %v389, %v385
  %v391 = vlaneseq
  %v392 = vshrl.u32 %v391, 7
  %v393 = vsub.s32 %v135, %v392
  %v394 = vrot.slane %v342, %v393
  %v395 = vlaneseq
  %v396 = vshrl.u32 %v395, 7
  %v397 = vsub.s32 %v140, %v396
  %v398 = vrot.slane %v345, %v397
  %v399 = vsel %vm145, %v398, %v394
  %v400 = vlaneseq
  %v401 = vshrl.u32 %v400, 7
  %v402 = vsub.s32 %v135, %v401
  %v403 = vrot.slane %v348, %v402
  %v404 = vlaneseq
  %v405 = vshrl.u32 %v404, 7
  %v406 = vsub.s32 %v140, %v405
  %v407 = vrot.slane %v351, %v406
  %v408 = vsel %vm145, %v407, %v403
  %v409 = vlaneseq
  %v410 = vshrl.u32 %v409, 7
  %v411 = vsub.s32 %v135, %v410
  %v412 = vrot.slane %v354, %v411
  %v413 = vlaneseq
  %v414 = vshrl.u32 %v413, 7
  %v415 = vsub.s32 %v140, %v414
  %v416 = vrot.slane %v357, %v415
  %v417 = vsel %vm145, %v416, %v412
  %v418 = vlaneseq
  %v419 = vshrl.u32 %v418, 7
  %v420 = vsub.s32 %v135, %v419
  %v421 = vrot.slane %v360, %v420
  %v422 = vlaneseq
  %v423 = vshrl.u32 %v422, 7
  %v424 = vsub.s32 %v140, %v423
  %v425 = vrot.slane %v363, %v424
  %v426 = vsel %vm145, %v425, %v421
  %v427 = vlaneseq
  %v428 = vshrl.u32 %v427, 7
  %v429 = vsub.s32 %v135, %v428
  %v430 = vrot.slane %v366, %v429
  %v431 = vlaneseq
  %v432 = vshrl.u32 %v431, 7
  %v433 = vsub.s32 %v140, %v432
  %v434 = vrot.slane %v369, %v433
  %v435 = vsel %vm145, %v434, %v430
  %v436 = vlaneseq
  %v437 = vshrl.u32 %v436, 7
  %v438 = vsub.s32 %v135, %v437
  %v439 = vrot.slane %v372, %v438
  %v440 = vlaneseq
  %v441 = vshrl.u32 %v440, 7
  %v442 = vsub.s32 %v140, %v441
  %v443 = vrot.slane %v375, %v442
  %v444 = vsel %vm145, %v443, %v439
  %v445 = vlaneseq
  %v446 = vshrl.u32 %v445, 7
  %v447 = vsub.s32 %v135, %v446
  %v448 = vrot.slane %v378, %v447
  %v449 = vlaneseq
  %v450 = vshrl.u32 %v449, 7
  %v451 = vsub.s32 %v140, %v450
  %v452 = vrot.slane %v381, %v451
  %v453 = vsel %vm145, %v452, %v448
  %v454 = vsel %vm210, %v399, %v390
  %v455 = vsel %vm212, %v408, %v454
  %v456 = vsel %vm214, %v417, %v455
  %v457 = vsel %vm216, %v426, %v456
  %v458 = vsel %vm218, %v435, %v457
  %v459 = vsel %vm220, %v444, %v458
  %v460 = vsel %vm222, %v453, %v459
  %v462 = vsel %vm225, %v460, 0.0
  %463 = vadd.xlane.f32.xlu0 %v462
  %v464 = vpop.xlane.xlu0 %463
  %v465 = vrcp.pop %v464
  %v467 = vlaneseq
  %v468 = vshrl.u32 %v467, 7
  %v469 = vsub.s32 0, %v468
  %v470 = vrot.slane %v465, %v469
  %v471 = vlaneseq
  %v472 = vshrl.u32 %v471, 7
  %v473 = vsub.s32 1, %v472
  %v474 = vrot.slane %v465, %v473
  %v475 = vlaneseq
  %v476 = vshrl.u32 %v475, 7
  %v477 = vsub.s32 2, %v476
  %v478 = vrot.slane %v465, %v477
  %v479 = vlaneseq
  %v480 = vshrl.u32 %v479, 7
  %v481 = vsub.s32 3, %v480
  %v482 = vrot.slane %v465, %v481
  %v483 = vlaneseq
  %v484 = vshrl.u32 %v483, 7
  %v485 = vsub.s32 4, %v484
  %v486 = vrot.slane %v465, %v485
  %v487 = vlaneseq
  %v488 = vshrl.u32 %v487, 7
  %v489 = vsub.s32 5, %v488
  %v490 = vrot.slane %v465, %v489
  %v491 = vlaneseq
  %v492 = vshrl.u32 %v491, 7
  %v493 = vsub.s32 6, %v492
  %v494 = vrot.slane %v465, %v493
  %v495 = vlaneseq
  %v496 = vshrl.u32 %v495, 7
  %v497 = vsub.s32 7, %v496
  %v498 = vrot.slane %v465, %v497
  %v507 = vmul.f32 %v287, %v470
  %v508 = vmul.f32 %v289, %v470
  %v509 = vmul.f32 %v291, %v474
  %v510 = vmul.f32 %v293, %v474
  %v511 = vmul.f32 %v295, %v478
  %v512 = vmul.f32 %v297, %v478
  %v513 = vmul.f32 %v299, %v482
  %v514 = vmul.f32 %v301, %v482
  %v515 = vmul.f32 %v303, %v486
  %v516 = vmul.f32 %v305, %v486
  %v517 = vmul.f32 %v307, %v490
  %v518 = vmul.f32 %v309, %v490
  %v519 = vmul.f32 %v311, %v494
  %v520 = vmul.f32 %v313, %v494
  %v521 = vmul.f32 %v315, %v498
  %v522 = vmul.f32 %v317, %v498
  %524 = vset.pattern.permute.xlu0 0
  %525 = vperm.xlu0 %524, %v507
  %v526 = vpop.permute.xlu0 %525
  %529 = vset.pattern.permute.xlu0 0
  %530 = vperm.xlu0 %529, %v508
  %v531 = vpop.permute.xlu0 %530
  %534 = vset.pattern.permute.xlu0 0
  %535 = vperm.xlu0 %534, %v509
  %v536 = vpop.permute.xlu0 %535
  %539 = vset.pattern.permute.xlu0 0
  %540 = vperm.xlu0 %539, %v510
  %v541 = vpop.permute.xlu0 %540
  %544 = vset.pattern.permute.xlu0 0
  %545 = vperm.xlu0 %544, %v511
  %v546 = vpop.permute.xlu0 %545
  %549 = vset.pattern.permute.xlu0 0
  %550 = vperm.xlu0 %549, %v512
  %v551 = vpop.permute.xlu0 %550
  %554 = vset.pattern.permute.xlu0 0
  %555 = vperm.xlu0 %554, %v513
  %v556 = vpop.permute.xlu0 %555
  %559 = vset.pattern.permute.xlu0 0
  %560 = vperm.xlu0 %559, %v514
  %v561 = vpop.permute.xlu0 %560
  %564 = vset.pattern.permute.xlu0 0
  %565 = vperm.xlu0 %564, %v515
  %v566 = vpop.permute.xlu0 %565
  %569 = vset.pattern.permute.xlu0 0
  %570 = vperm.xlu0 %569, %v516
  %v571 = vpop.permute.xlu0 %570
  %574 = vset.pattern.permute.xlu0 0
  %575 = vperm.xlu0 %574, %v517
  %v576 = vpop.permute.xlu0 %575
  %579 = vset.pattern.permute.xlu0 0
  %580 = vperm.xlu0 %579, %v518
  %v581 = vpop.permute.xlu0 %580
  %584 = vset.pattern.permute.xlu0 0
  %585 = vperm.xlu0 %584, %v519
  %v586 = vpop.permute.xlu0 %585
  %589 = vset.pattern.permute.xlu0 0
  %590 = vperm.xlu0 %589, %v520
  %v591 = vpop.permute.xlu0 %590
  %594 = vset.pattern.permute.xlu0 0
  %595 = vperm.xlu0 %594, %v521
  %v596 = vpop.permute.xlu0 %595
  %599 = vset.pattern.permute.xlu0 0
  %600 = vperm.xlu0 %599, %v522
  %v601 = vpop.permute.xlu0 %600
  %v603 = vmul.f32 %v47, %v526
  %v604 = vmul.f32 %v48, %v531
  %v605 = vmul.f32 %v49, %v536
  %v606 = vmul.f32 %v50, %v541
  %v607 = vmul.f32 %v51, %v546
  %v608 = vmul.f32 %v52, %v551
  %v609 = vmul.f32 %v53, %v556
  %v610 = vmul.f32 %v54, %v561
  %v611 = vmul.f32 %v55, %v566
  %v612 = vmul.f32 %v56, %v571
  %v613 = vmul.f32 %v57, %v576
  %v614 = vmul.f32 %v58, %v581
  %v615 = vmul.f32 %v59, %v586
  %v616 = vmul.f32 %v60, %v591
  %v617 = vmul.f32 %v61, %v596
  %v618 = vmul.f32 %v62, %v601
  %v619 = vadd.f32 %v603, %v604
  %v620 = vrot.slane %v619, 4
  %v621 = vadd.f32 %v619, %v620
  %v622 = vrot.slane %v621, 2
  %v623 = vadd.f32 %v621, %v622
  %v624 = vrot.slane %v623, 1
  %v625 = vadd.f32 %v623, %v624
  %v626 = vadd.f32 %v605, %v606
  %v627 = vrot.slane %v626, 4
  %v628 = vadd.f32 %v626, %v627
  %v629 = vrot.slane %v628, 2
  %v630 = vadd.f32 %v628, %v629
  %v631 = vrot.slane %v630, 1
  %v632 = vadd.f32 %v630, %v631
  %v633 = vadd.f32 %v607, %v608
  %v634 = vrot.slane %v633, 4
  %v635 = vadd.f32 %v633, %v634
  %v636 = vrot.slane %v635, 2
  %v637 = vadd.f32 %v635, %v636
  %v638 = vrot.slane %v637, 1
  %v639 = vadd.f32 %v637, %v638
  %v640 = vadd.f32 %v609, %v610
  %v641 = vrot.slane %v640, 4
  %v642 = vadd.f32 %v640, %v641
  %v643 = vrot.slane %v642, 2
  %v644 = vadd.f32 %v642, %v643
  %v645 = vrot.slane %v644, 1
  %v646 = vadd.f32 %v644, %v645
  %v647 = vadd.f32 %v611, %v612
  %v648 = vrot.slane %v647, 4
  %v649 = vadd.f32 %v647, %v648
  %v650 = vrot.slane %v649, 2
  %v651 = vadd.f32 %v649, %v650
  %v652 = vrot.slane %v651, 1
  %v653 = vadd.f32 %v651, %v652
  %v654 = vadd.f32 %v613, %v614
  %v655 = vrot.slane %v654, 4
  %v656 = vadd.f32 %v654, %v655
  %v657 = vrot.slane %v656, 2
  %v658 = vadd.f32 %v656, %v657
  %v659 = vrot.slane %v658, 1
  %v660 = vadd.f32 %v658, %v659
  %v661 = vadd.f32 %v615, %v616
  %v662 = vrot.slane %v661, 4
  %v663 = vadd.f32 %v661, %v662
  %v664 = vrot.slane %v663, 2
  %v665 = vadd.f32 %v663, %v664
  %v666 = vrot.slane %v665, 1
  %v667 = vadd.f32 %v665, %v666
  %v668 = vadd.f32 %v617, %v618
  %v669 = vrot.slane %v668, 4
  %v670 = vadd.f32 %v668, %v669
  %v671 = vrot.slane %v670, 2
  %v672 = vadd.f32 %v670, %v671
  %v673 = vrot.slane %v672, 1
  %v674 = vadd.f32 %v672, %v673
  %v675 = vld [vmem:[%s3] sm:$0x1]
  %v676 = vld [vmem:[%s2] sm:$0xff]
  %v677 = vld [vmem:[%s2 + $0x8] sm:$0xff]
  %v678 = vld [vmem:[%s2 + $0x10] sm:$0xff]
  %v679 = vld [vmem:[%s2 + $0x18] sm:$0xff]
  %v680 = vld [vmem:[%s2 + $0x20] sm:$0xff]
  %v681 = vld [vmem:[%s2 + $0x28] sm:$0xff]
  %v682 = vld [vmem:[%s2 + $0x30] sm:$0xff]
  %v683 = vld [vmem:[%s2 + $0x38] sm:$0xff]
  %v684 = vld [vmem:[%s2 + $0x40] sm:$0xff]
  %v685 = vld [vmem:[%s2 + $0x48] sm:$0xff]
  %v686 = vld [vmem:[%s2 + $0x50] sm:$0xff]
  %v687 = vld [vmem:[%s2 + $0x58] sm:$0xff]
  %v688 = vld [vmem:[%s2 + $0x60] sm:$0xff]
  %v689 = vld [vmem:[%s2 + $0x68] sm:$0xff]
  %v690 = vld [vmem:[%s2 + $0x70] sm:$0xff]
  %v691 = vld [vmem:[%s2 + $0x78] sm:$0xff]
  %v693 = vlaneseq
  %v694 = vshrl.u32 %v693, 7
  %v695 = vsub.s32 0, %v694
  %v696 = vrot.slane %v675, %v695
  %v706 = vsel %vm210, %v632, %v625
  %v707 = vsel %vm212, %v639, %v706
  %v708 = vsel %vm214, %v646, %v707
  %v709 = vsel %vm216, %v653, %v708
  %v710 = vsel %vm218, %v660, %v709
  %v711 = vsel %vm220, %v667, %v710
  %v712 = vsel %vm222, %v674, %v711
  %714 = vmatprep.subr.mxu0 0.0
  %715 = vmatpush1.msra.mxu0 %v676
  %716 = vmatprep.subr.mxu0 0.0
  %717 = vmatpush1.msra.mxu0 %v677
  %718 = vmatprep.subr.mxu0 0.0
  %719 = vmatpush1.msra.mxu0 %v678
  %720 = vmatprep.subr.mxu0 0.0
  %721 = vmatpush1.msra.mxu0 %v679
  %722 = vmatprep.subr.mxu0 0.0
  %723 = vmatpush1.msra.mxu0 %v680
  %724 = vmatprep.subr.mxu0 0.0
  %725 = vmatpush1.msra.mxu0 %v681
  %726 = vmatprep.subr.mxu0 0.0
  %727 = vmatpush1.msra.mxu0 %v682
  %728 = vmatprep.subr.mxu0 0.0
  %729 = vmatpush1.msra.mxu0 %v683
  %730 = vmatprep.subr.mxu0 0.0
  %731 = vmatpush1.msra.mxu0 %v684
  %732 = vmatprep.subr.mxu0 0.0
  %733 = vmatpush1.msra.mxu0 %v685
  %734 = vmatprep.subr.mxu0 0.0
  %735 = vmatpush1.msra.mxu0 %v686
  %736 = vmatprep.subr.mxu0 0.0
  %737 = vmatpush1.msra.mxu0 %v687
  %738 = vmatprep.subr.mxu0 0.0
  %739 = vmatpush1.msra.mxu0 %v688
  %740 = vmatprep.subr.mxu0 0.0
  %741 = vmatpush1.msra.mxu0 %v689
  %742 = vmatprep.subr.mxu0 0.0
  %743 = vmatpush1.msra.mxu0 %v690
  %744 = vmatprep.subr.mxu0 0.0
  %745 = vmatpush1.msra.mxu0 %v691
  %746 = vmatprep.subr.mxu0 0.0
  %747 = vmatpush1.msra.mxu0 0.0
  %748 = vmatprep.subr.mxu0 0.0
  %749 = vmatpush1.msra.mxu0 0.0
  %750 = vmatprep.subr.mxu0 0.0
  %751 = vmatpush1.msra.mxu0 0.0
  %752 = vmatprep.subr.mxu0 0.0
  %753 = vmatpush1.msra.mxu0 0.0
  %754 = vmatprep.subr.mxu0 0.0
  %755 = vmatpush1.msra.mxu0 0.0
  %756 = vmatprep.subr.mxu0 0.0
  %757 = vmatpush1.msra.mxu0 0.0
  %758 = vmatprep.subr.mxu0 0.0
  %759 = vmatpush1.msra.mxu0 0.0
  %760 = vmatprep.subr.mxu0 0.0
  %761 = vmatpush1.msra.mxu0 0.0
  %762 = vmatprep.subr.mxu0 0.0
  %763 = vmatpush1.msra.mxu0 0.0
  %764 = vmatprep.subr.mxu0 0.0
  %765 = vmatpush1.msra.mxu0 0.0
  %766 = vmatprep.subr.mxu0 0.0
  %767 = vmatpush1.msra.mxu0 0.0
  %768 = vmatprep.subr.mxu0 0.0
  %769 = vmatpush1.msra.mxu0 0.0
  %770 = vmatprep.subr.mxu0 0.0
  %771 = vmatpush1.msra.mxu0 0.0
  %772 = vmatprep.subr.mxu0 0.0
  %773 = vmatpush1.msra.mxu0 0.0
  %774 = vmatprep.subr.mxu0 0.0
  %775 = vmatpush1.msra.mxu0 0.0
  %776 = vmatprep.subr.mxu0 0.0
  %777 = vmatpush1.msra.mxu0 0.0
  %778 = vmatprep.mubr.f32.mxu0 0.0
  %779 = vmatmul.mubr.f32.gmra.mrb[0].mxu0 %v712
  %v780 = vpop.f32.mrb[0].mxu0
  %v781 = vadd.f32 %v696, %v780
  %v782 = vpop.f32.mrb[0].mxu0
  %783 = vdwg.mxu0
  %v784 = vmax.f32 %v781, 0.0
  %v785 = vld [vmem:[%s8] sm:$0xff]
  %v786 = vld [vmem:[%s8 + $0x8] sm:$0xff]
  %v787 = vld [vmem:[%s8 + $0x10] sm:$0xff]
  %v788 = vld [vmem:[%s8 + $0x18] sm:$0xff]
  %v789 = vld [vmem:[%s5] sm:$0x1]
  %v790 = vld [vmem:[%s4] sm:$0xff]
  %v791 = vld [vmem:[%s4 + $0x8] sm:$0xff]
  %v792 = vld [vmem:[%s4 + $0x10] sm:$0xff]
  %v793 = vld [vmem:[%s4 + $0x18] sm:$0xff]
  %v794 = vld [vmem:[%s4 + $0x20] sm:$0xff]
  %v795 = vld [vmem:[%s4 + $0x28] sm:$0xff]
  %v796 = vld [vmem:[%s4 + $0x30] sm:$0xff]
  %v797 = vld [vmem:[%s4 + $0x38] sm:$0xff]
  %v798 = vld [vmem:[%s4 + $0x40] sm:$0xff]
  %v799 = vld [vmem:[%s4 + $0x48] sm:$0xff]
  %v800 = vld [vmem:[%s4 + $0x50] sm:$0xff]
  %v801 = vld [vmem:[%s4 + $0x58] sm:$0xff]
  %v802 = vld [vmem:[%s4 + $0x60] sm:$0xff]
  %v803 = vld [vmem:[%s4 + $0x68] sm:$0xff]
  %v804 = vld [vmem:[%s4 + $0x70] sm:$0xff]
  %v805 = vld [vmem:[%s4 + $0x78] sm:$0xff]
  %v807 = vlaneseq
  %v808 = vshrl.u32 %v807, 7
  %v809 = vsub.s32 0, %v808
  %v810 = vrot.slane %v789, %v809
  %812 = vmatprep.subr.mxu0 0.0
  %813 = vmatpush1.msra.mxu0 %v790
  %814 = vmatprep.subr.mxu0 0.0
  %815 = vmatpush1.msra.mxu0 %v791
  %816 = vmatprep.subr.mxu0 0.0
  %817 = vmatpush1.msra.mxu0 %v792
  %818 = vmatprep.subr.mxu0 0.0
  %819 = vmatpush1.msra.mxu0 %v793
  %820 = vmatprep.subr.mxu0 0.0
  %821 = vmatpush1.msra.mxu0 %v794
  %822 = vmatprep.subr.mxu0 0.0
  %823 = vmatpush1.msra.mxu0 %v795
  %824 = vmatprep.subr.mxu0 0.0
  %825 = vmatpush1.msra.mxu0 %v796
  %826 = vmatprep.subr.mxu0 0.0
  %827 = vmatpush1.msra.mxu0 %v797
  %828 = vmatprep.subr.mxu0 0.0
  %829 = vmatpush1.msra.mxu0 %v798
  %830 = vmatprep.subr.mxu0 0.0
  %831 = vmatpush1.msra.mxu0 %v799
  %832 = vmatprep.subr.mxu0 0.0
  %833 = vmatpush1.msra.mxu0 %v800
  %834 = vmatprep.subr.mxu0 0.0
  %835 = vmatpush1.msra.mxu0 %v801
  %836 = vmatprep.subr.mxu0 0.0
  %837 = vmatpush1.msra.mxu0 %v802
  %838 = vmatprep.subr.mxu0 0.0
  %839 = vmatpush1.msra.mxu0 %v803
  %840 = vmatprep.subr.mxu0 0.0
  %841 = vmatpush1.msra.mxu0 %v804
  %842 = vmatprep.subr.mxu0 0.0
  %843 = vmatpush1.msra.mxu0 %v805
  %844 = vmatprep.subr.mxu0 0.0
  %845 = vmatpush1.msra.mxu0 0.0
  %846 = vmatprep.subr.mxu0 0.0
  %847 = vmatpush1.msra.mxu0 0.0
  %848 = vmatprep.subr.mxu0 0.0
  %849 = vmatpush1.msra.mxu0 0.0
  %850 = vmatprep.subr.mxu0 0.0
  %851 = vmatpush1.msra.mxu0 0.0
  %852 = vmatprep.subr.mxu0 0.0
  %853 = vmatpush1.msra.mxu0 0.0
  %854 = vmatprep.subr.mxu0 0.0
  %855 = vmatpush1.msra.mxu0 0.0
  %856 = vmatprep.subr.mxu0 0.0
  %857 = vmatpush1.msra.mxu0 0.0
  %858 = vmatprep.subr.mxu0 0.0
  %859 = vmatpush1.msra.mxu0 0.0
  %860 = vmatprep.subr.mxu0 0.0
  %861 = vmatpush1.msra.mxu0 0.0
  %862 = vmatprep.subr.mxu0 0.0
  %863 = vmatpush1.msra.mxu0 0.0
  %864 = vmatprep.subr.mxu0 0.0
  %865 = vmatpush1.msra.mxu0 0.0
  %866 = vmatprep.subr.mxu0 0.0
  %867 = vmatpush1.msra.mxu0 0.0
  %868 = vmatprep.subr.mxu0 0.0
  %869 = vmatpush1.msra.mxu0 0.0
  %870 = vmatprep.subr.mxu0 0.0
  %871 = vmatpush1.msra.mxu0 0.0
  %872 = vmatprep.subr.mxu0 0.0
  %873 = vmatpush1.msra.mxu0 0.0
  %874 = vmatprep.subr.mxu0 0.0
  %875 = vmatpush1.msra.mxu0 0.0
  %876 = vmatprep.mubr.f32.mxu0 0.0
  %877 = vmatmul.mubr.f32.gmra.mrb[0].mxu0 %v712
  %v878 = vpop.f32.mrb[0].mxu0
  %v879 = vadd.f32 %v810, %v878
  %v880 = vpop.f32.mrb[0].mxu0
  %881 = vdwg.mxu0
  %s882 = scalar_lea.vmem %s4, 128
  %v883 = vld [vmem:[%s882] sm:$0xff]
  %v884 = vld [vmem:[%s882 + $0x8] sm:$0xff]
  %v885 = vld [vmem:[%s882 + $0x10] sm:$0xff]
  %v886 = vld [vmem:[%s882 + $0x18] sm:$0xff]
  %v887 = vld [vmem:[%s882 + $0x20] sm:$0xff]
  %v888 = vld [vmem:[%s882 + $0x28] sm:$0xff]
  %v889 = vld [vmem:[%s882 + $0x30] sm:$0xff]
  %v890 = vld [vmem:[%s882 + $0x38] sm:$0xff]
  %v891 = vld [vmem:[%s882 + $0x40] sm:$0xff]
  %v892 = vld [vmem:[%s882 + $0x48] sm:$0xff]
  %v893 = vld [vmem:[%s882 + $0x50] sm:$0xff]
  %v894 = vld [vmem:[%s882 + $0x58] sm:$0xff]
  %v895 = vld [vmem:[%s882 + $0x60] sm:$0xff]
  %v896 = vld [vmem:[%s882 + $0x68] sm:$0xff]
  %v897 = vld [vmem:[%s882 + $0x70] sm:$0xff]
  %v898 = vld [vmem:[%s882 + $0x78] sm:$0xff]
  %899 = vmatprep.subr.mxu0 0.0
  %900 = vmatpush1.msra.mxu0 %v883
  %901 = vmatprep.subr.mxu0 0.0
  %902 = vmatpush1.msra.mxu0 %v884
  %903 = vmatprep.subr.mxu0 0.0
  %904 = vmatpush1.msra.mxu0 %v885
  %905 = vmatprep.subr.mxu0 0.0
  %906 = vmatpush1.msra.mxu0 %v886
  %907 = vmatprep.subr.mxu0 0.0
  %908 = vmatpush1.msra.mxu0 %v887
  %909 = vmatprep.subr.mxu0 0.0
  %910 = vmatpush1.msra.mxu0 %v888
  %911 = vmatprep.subr.mxu0 0.0
  %912 = vmatpush1.msra.mxu0 %v889
  %913 = vmatprep.subr.mxu0 0.0
  %914 = vmatpush1.msra.mxu0 %v890
  %915 = vmatprep.subr.mxu0 0.0
  %916 = vmatpush1.msra.mxu0 %v891
  %917 = vmatprep.subr.mxu0 0.0
  %918 = vmatpush1.msra.mxu0 %v892
  %919 = vmatprep.subr.mxu0 0.0
  %920 = vmatpush1.msra.mxu0 %v893
  %921 = vmatprep.subr.mxu0 0.0
  %922 = vmatpush1.msra.mxu0 %v894
  %923 = vmatprep.subr.mxu0 0.0
  %924 = vmatpush1.msra.mxu0 %v895
  %925 = vmatprep.subr.mxu0 0.0
  %926 = vmatpush1.msra.mxu0 %v896
  %927 = vmatprep.subr.mxu0 0.0
  %928 = vmatpush1.msra.mxu0 %v897
  %929 = vmatprep.subr.mxu0 0.0
  %930 = vmatpush1.msra.mxu0 %v898
  %931 = vmatprep.subr.mxu0 0.0
  %932 = vmatpush1.msra.mxu0 0.0
  %933 = vmatprep.subr.mxu0 0.0
  %934 = vmatpush1.msra.mxu0 0.0
  %935 = vmatprep.subr.mxu0 0.0
  %936 = vmatpush1.msra.mxu0 0.0
  %937 = vmatprep.subr.mxu0 0.0
  %938 = vmatpush1.msra.mxu0 0.0
  %939 = vmatprep.subr.mxu0 0.0
  %940 = vmatpush1.msra.mxu0 0.0
  %941 = vmatprep.subr.mxu0 0.0
  %942 = vmatpush1.msra.mxu0 0.0
  %943 = vmatprep.subr.mxu0 0.0
  %944 = vmatpush1.msra.mxu0 0.0
  %945 = vmatprep.subr.mxu0 0.0
  %946 = vmatpush1.msra.mxu0 0.0
  %947 = vmatprep.subr.mxu0 0.0
  %948 = vmatpush1.msra.mxu0 0.0
  %949 = vmatprep.subr.mxu0 0.0
  %950 = vmatpush1.msra.mxu0 0.0
  %951 = vmatprep.subr.mxu0 0.0
  %952 = vmatpush1.msra.mxu0 0.0
  %953 = vmatprep.subr.mxu0 0.0
  %954 = vmatpush1.msra.mxu0 0.0
  %955 = vmatprep.subr.mxu0 0.0
  %956 = vmatpush1.msra.mxu0 0.0
  %957 = vmatprep.subr.mxu0 0.0
  %958 = vmatpush1.msra.mxu0 0.0
  %959 = vmatprep.subr.mxu0 0.0
  %960 = vmatpush1.msra.mxu0 0.0
  %961 = vmatprep.subr.mxu0 0.0
  %962 = vmatpush1.msra.mxu0 0.0
  %963 = vmatprep.mubr.f32.mxu0 0.0
  %964 = vmatmul.mubr.f32.gmra.mrb[0].mxu0 %v712
  %v965 = vpop.f32.mrb[0].mxu0
  %v966 = vadd.f32 %v810, %v965
  %v967 = vpop.f32.mrb[0].mxu0
  %968 = vdwg.mxu0
  %v969 = vmax.f32 %v879, %v966
  %v970 = vmax.f32 %v969, 0.0
  %v971 = vld [vmem:[%s9] sm:$0xff]
  %v972 = vld [vmem:[%s9 + $0x8] sm:$0xff]
  %v973 = vld [vmem:[%s9 + $0x10] sm:$0xff]
  %v974 = vld [vmem:[%s9 + $0x18] sm:$0xff]
  %vm975 = vcmask 261120
  %v977 = vsel %vm975, %v970, 0
  %979 = vmatprep.subr.mxu0 0.0
  %980 = vmatpush1.msra.mxu0 %v971
  %981 = vmatprep.subr.mxu0 0.0
  %982 = vmatpush1.msra.mxu0 %v972
  %983 = vmatprep.subr.mxu0 0.0
  %984 = vmatpush1.msra.mxu0 %v973
  %985 = vmatprep.subr.mxu0 0.0
  %986 = vmatpush1.msra.mxu0 %v974
  %987 = vmatprep.subr.mxu0 0.0
  %988 = vmatpush1.msra.mxu0 0.0
  %989 = vmatprep.subr.mxu0 0.0
  %990 = vmatpush1.msra.mxu0 0.0
  %991 = vmatprep.subr.mxu0 0.0
  %992 = vmatpush1.msra.mxu0 0.0
  %993 = vmatprep.subr.mxu0 0.0
  %994 = vmatpush1.msra.mxu0 0.0
  %995 = vmatprep.subr.mxu0 0.0
  %996 = vmatpush1.msra.mxu0 0.0
  %997 = vmatprep.subr.mxu0 0.0
  %998 = vmatpush1.msra.mxu0 0.0
  %999 = vmatprep.subr.mxu0 0.0
  %1000 = vmatpush1.msra.mxu0 0.0
  %1001 = vmatprep.subr.mxu0 0.0
  %1002 = vmatpush1.msra.mxu0 0.0
  %1003 = vmatprep.subr.mxu0 0.0
  %1004 = vmatpush1.msra.mxu0 0.0
  %1005 = vmatprep.subr.mxu0 0.0
  %1006 = vmatpush1.msra.mxu0 0.0
  %1007 = vmatprep.subr.mxu0 0.0
  %1008 = vmatpush1.msra.mxu0 0.0
  %1009 = vmatprep.subr.mxu0 0.0
  %1010 = vmatpush1.msra.mxu0 0.0
  %1011 = vmatprep.subr.mxu0 0.0
  %1012 = vmatpush1.msra.mxu0 0.0
  %1013 = vmatprep.subr.mxu0 0.0
  %1014 = vmatpush1.msra.mxu0 0.0
  %1015 = vmatprep.subr.mxu0 0.0
  %1016 = vmatpush1.msra.mxu0 0.0
  %1017 = vmatprep.subr.mxu0 0.0
  %1018 = vmatpush1.msra.mxu0 0.0
  %1019 = vmatprep.subr.mxu0 0.0
  %1020 = vmatpush1.msra.mxu0 0.0
  %1021 = vmatprep.subr.mxu0 0.0
  %1022 = vmatpush1.msra.mxu0 0.0
  %1023 = vmatprep.subr.mxu0 0.0
  %1024 = vmatpush1.msra.mxu0 0.0
  %1025 = vmatprep.subr.mxu0 0.0
  %1026 = vmatpush1.msra.mxu0 0.0
  %1027 = vmatprep.subr.mxu0 0.0
  %1028 = vmatpush1.msra.mxu0 0.0
  %1029 = vmatprep.subr.mxu0 0.0
  %1030 = vmatpush1.msra.mxu0 0.0
  %1031 = vmatprep.subr.mxu0 0.0
  %1032 = vmatpush1.msra.mxu0 0.0
  %1033 = vmatprep.subr.mxu0 0.0
  %1034 = vmatpush1.msra.mxu0 0.0
  %1035 = vmatprep.subr.mxu0 0.0
  %1036 = vmatpush1.msra.mxu0 0.0
  %1037 = vmatprep.subr.mxu0 0.0
  %1038 = vmatpush1.msra.mxu0 0.0
  %1039 = vmatprep.subr.mxu0 0.0
  %1040 = vmatpush1.msra.mxu0 0.0
  %1041 = vmatprep.subr.mxu0 0.0
  %1042 = vmatpush1.msra.mxu0 0.0
  %1043 = vmatprep.mubr.f32.mxu0 0.0
  %1044 = vmatmul.mubr.f32.gmra.mrb[0].mxu0 %v977
  %v1045 = vpop.f32.mrb[0].mxu0
  %v1046 = vadd.f32 0.0, %v1045
  %v1047 = vpop.f32.mrb[0].mxu0
  %1048 = vdwg.mxu0
  %v1050 = vsel %vm975, %v784, 0
  %1052 = vmatprep.subr.mxu0 0.0
  %1053 = vmatpush1.msra.mxu0 %v785
  %1054 = vmatprep.subr.mxu0 0.0
  %1055 = vmatpush1.msra.mxu0 %v786
  %1056 = vmatprep.subr.mxu0 0.0
  %1057 = vmatpush1.msra.mxu0 %v787
  %1058 = vmatprep.subr.mxu0 0.0
  %1059 = vmatpush1.msra.mxu0 %v788
  %1060 = vmatprep.subr.mxu0 0.0
  %1061 = vmatpush1.msra.mxu0 0.0
  %1062 = vmatprep.subr.mxu0 0.0
  %1063 = vmatpush1.msra.mxu0 0.0
  %1064 = vmatprep.subr.mxu0 0.0
  %1065 = vmatpush1.msra.mxu0 0.0
  %1066 = vmatprep.subr.mxu0 0.0
  %1067 = vmatpush1.msra.mxu0 0.0
  %1068 = vmatprep.subr.mxu0 0.0
  %1069 = vmatpush1.msra.mxu0 0.0
  %1070 = vmatprep.subr.mxu0 0.0
  %1071 = vmatpush1.msra.mxu0 0.0
  %1072 = vmatprep.subr.mxu0 0.0
  %1073 = vmatpush1.msra.mxu0 0.0
  %1074 = vmatprep.subr.mxu0 0.0
  %1075 = vmatpush1.msra.mxu0 0.0
  %1076 = vmatprep.subr.mxu0 0.0
  %1077 = vmatpush1.msra.mxu0 0.0
  %1078 = vmatprep.subr.mxu0 0.0
  %1079 = vmatpush1.msra.mxu0 0.0
  %1080 = vmatprep.subr.mxu0 0.0
  %1081 = vmatpush1.msra.mxu0 0.0
  %1082 = vmatprep.subr.mxu0 0.0
  %1083 = vmatpush1.msra.mxu0 0.0
  %1084 = vmatprep.subr.mxu0 0.0
  %1085 = vmatpush1.msra.mxu0 0.0
  %1086 = vmatprep.subr.mxu0 0.0
  %1087 = vmatpush1.msra.mxu0 0.0
  %1088 = vmatprep.subr.mxu0 0.0
  %1089 = vmatpush1.msra.mxu0 0.0
  %1090 = vmatprep.subr.mxu0 0.0
  %1091 = vmatpush1.msra.mxu0 0.0
  %1092 = vmatprep.subr.mxu0 0.0
  %1093 = vmatpush1.msra.mxu0 0.0
  %1094 = vmatprep.subr.mxu0 0.0
  %1095 = vmatpush1.msra.mxu0 0.0
  %1096 = vmatprep.subr.mxu0 0.0
  %1097 = vmatpush1.msra.mxu0 0.0
  %1098 = vmatprep.subr.mxu0 0.0
  %1099 = vmatpush1.msra.mxu0 0.0
  %1100 = vmatprep.subr.mxu0 0.0
  %1101 = vmatpush1.msra.mxu0 0.0
  %1102 = vmatprep.subr.mxu0 0.0
  %1103 = vmatpush1.msra.mxu0 0.0
  %1104 = vmatprep.subr.mxu0 0.0
  %1105 = vmatpush1.msra.mxu0 0.0
  %1106 = vmatprep.subr.mxu0 0.0
  %1107 = vmatpush1.msra.mxu0 0.0
  %1108 = vmatprep.subr.mxu0 0.0
  %1109 = vmatpush1.msra.mxu0 0.0
  %1110 = vmatprep.subr.mxu0 0.0
  %1111 = vmatpush1.msra.mxu0 0.0
  %1112 = vmatprep.subr.mxu0 0.0
  %1113 = vmatpush1.msra.mxu0 0.0
  %1114 = vmatprep.subr.mxu0 0.0
  %1115 = vmatpush1.msra.mxu0 0.0
  %1116 = vmatprep.mubr.f32.mxu0 0.0
  %1117 = vmatmul.mubr.f32.gmra.mrb[0].mxu0 %v1050
  %v1118 = vpop.f32.mrb[0].mxu0
  %v1119 = vadd.f32 %v1046, %v1118
  %v1120 = vpop.f32.mrb[0].mxu0
  %1121 = vdwg.mxu0
  %v1122 = vld [vmem:[%s7] sm:$0x1]
  %v1123 = vld [vmem:[%s6] sm:$0xff]
  %v1124 = vld [vmem:[%s6 + $0x8] sm:$0xff]
  %v1125 = vld [vmem:[%s6 + $0x10] sm:$0xff]
  %v1126 = vld [vmem:[%s6 + $0x18] sm:$0xff]
  %v1127 = vld [vmem:[%s6 + $0x20] sm:$0xff]
  %v1128 = vld [vmem:[%s6 + $0x28] sm:$0xff]
  %v1129 = vld [vmem:[%s6 + $0x30] sm:$0xff]
  %v1130 = vld [vmem:[%s6 + $0x38] sm:$0xff]
  %v1131 = vld [vmem:[%s6 + $0x40] sm:$0xff]
  %v1132 = vld [vmem:[%s6 + $0x48] sm:$0xff]
  %v1133 = vld [vmem:[%s6 + $0x50] sm:$0xff]
  %v1134 = vld [vmem:[%s6 + $0x58] sm:$0xff]
  %v1135 = vld [vmem:[%s6 + $0x60] sm:$0xff]
  %v1136 = vld [vmem:[%s6 + $0x68] sm:$0xff]
  %v1137 = vld [vmem:[%s6 + $0x70] sm:$0xff]
  %v1138 = vld [vmem:[%s6 + $0x78] sm:$0xff]
  %v1140 = vlaneseq
  %v1141 = vshrl.u32 %v1140, 7
  %v1142 = vsub.s32 0, %v1141
  %v1143 = vrot.slane %v1122, %v1142
  %1145 = vmatprep.subr.mxu0 0.0
  %1146 = vmatpush1.msra.mxu0 %v1123
  %1147 = vmatprep.subr.mxu0 0.0
  %1148 = vmatpush1.msra.mxu0 %v1124
  %1149 = vmatprep.subr.mxu0 0.0
  %1150 = vmatpush1.msra.mxu0 %v1125
  %1151 = vmatprep.subr.mxu0 0.0
  %1152 = vmatpush1.msra.mxu0 %v1126
  %1153 = vmatprep.subr.mxu0 0.0
  %1154 = vmatpush1.msra.mxu0 %v1127
  %1155 = vmatprep.subr.mxu0 0.0
  %1156 = vmatpush1.msra.mxu0 %v1128
  %1157 = vmatprep.subr.mxu0 0.0
  %1158 = vmatpush1.msra.mxu0 %v1129
  %1159 = vmatprep.subr.mxu0 0.0
  %1160 = vmatpush1.msra.mxu0 %v1130
  %1161 = vmatprep.subr.mxu0 0.0
  %1162 = vmatpush1.msra.mxu0 %v1131
  %1163 = vmatprep.subr.mxu0 0.0
  %1164 = vmatpush1.msra.mxu0 %v1132
  %1165 = vmatprep.subr.mxu0 0.0
  %1166 = vmatpush1.msra.mxu0 %v1133
  %1167 = vmatprep.subr.mxu0 0.0
  %1168 = vmatpush1.msra.mxu0 %v1134
  %1169 = vmatprep.subr.mxu0 0.0
  %1170 = vmatpush1.msra.mxu0 %v1135
  %1171 = vmatprep.subr.mxu0 0.0
  %1172 = vmatpush1.msra.mxu0 %v1136
  %1173 = vmatprep.subr.mxu0 0.0
  %1174 = vmatpush1.msra.mxu0 %v1137
  %1175 = vmatprep.subr.mxu0 0.0
  %1176 = vmatpush1.msra.mxu0 %v1138
  %1177 = vmatprep.subr.mxu0 0.0
  %1178 = vmatpush1.msra.mxu0 0.0
  %1179 = vmatprep.subr.mxu0 0.0
  %1180 = vmatpush1.msra.mxu0 0.0
  %1181 = vmatprep.subr.mxu0 0.0
  %1182 = vmatpush1.msra.mxu0 0.0
  %1183 = vmatprep.subr.mxu0 0.0
  %1184 = vmatpush1.msra.mxu0 0.0
  %1185 = vmatprep.subr.mxu0 0.0
  %1186 = vmatpush1.msra.mxu0 0.0
  %1187 = vmatprep.subr.mxu0 0.0
  %1188 = vmatpush1.msra.mxu0 0.0
  %1189 = vmatprep.subr.mxu0 0.0
  %1190 = vmatpush1.msra.mxu0 0.0
  %1191 = vmatprep.subr.mxu0 0.0
  %1192 = vmatpush1.msra.mxu0 0.0
  %1193 = vmatprep.subr.mxu0 0.0
  %1194 = vmatpush1.msra.mxu0 0.0
  %1195 = vmatprep.subr.mxu0 0.0
  %1196 = vmatpush1.msra.mxu0 0.0
  %1197 = vmatprep.subr.mxu0 0.0
  %1198 = vmatpush1.msra.mxu0 0.0
  %1199 = vmatprep.subr.mxu0 0.0
  %1200 = vmatpush1.msra.mxu0 0.0
  %1201 = vmatprep.subr.mxu0 0.0
  %1202 = vmatpush1.msra.mxu0 0.0
  %1203 = vmatprep.subr.mxu0 0.0
  %1204 = vmatpush1.msra.mxu0 0.0
  %1205 = vmatprep.subr.mxu0 0.0
  %1206 = vmatpush1.msra.mxu0 0.0
  %1207 = vmatprep.subr.mxu0 0.0
  %1208 = vmatpush1.msra.mxu0 0.0
  %1209 = vmatprep.mubr.f32.mxu0 0.0
  %1210 = vmatmul.mubr.f32.gmra.mrb[0].mxu0 %v712
  %v1211 = vpop.f32.mrb[0].mxu0
  %v1212 = vadd.f32 %v1143, %v1211
  %v1213 = vpop.f32.mrb[0].mxu0
  %1214 = vdwg.mxu0
  %v1215 = vmax.f32 %v1212, 0.0
  %v1216 = vld [vmem:[%s10] sm:$0xff]
  %v1217 = vld [vmem:[%s10 + $0x8] sm:$0xff]
  %v1218 = vld [vmem:[%s10 + $0x10] sm:$0xff]
  %v1219 = vld [vmem:[%s10 + $0x18] sm:$0xff]
  %v1221 = vsel %vm975, %v1215, 0
  %1223 = vmatprep.subr.mxu0 0.0
  %1224 = vmatpush1.msra.mxu0 %v1216
  %1225 = vmatprep.subr.mxu0 0.0
  %1226 = vmatpush1.msra.mxu0 %v1217
  %1227 = vmatprep.subr.mxu0 0.0
  %1228 = vmatpush1.msra.mxu0 %v1218
  %1229 = vmatprep.subr.mxu0 0.0
  %1230 = vmatpush1.msra.mxu0 %v1219
  %1231 = vmatprep.subr.mxu0 0.0
  %1232 = vmatpush1.msra.mxu0 0.0
  %1233 = vmatprep.subr.mxu0 0.0
  %1234 = vmatpush1.msra.mxu0 0.0
  %1235 = vmatprep.subr.mxu0 0.0
  %1236 = vmatpush1.msra.mxu0 0.0
  %1237 = vmatprep.subr.mxu0 0.0
  %1238 = vmatpush1.msra.mxu0 0.0
  %1239 = vmatprep.subr.mxu0 0.0
  %1240 = vmatpush1.msra.mxu0 0.0
  %1241 = vmatprep.subr.mxu0 0.0
  %1242 = vmatpush1.msra.mxu0 0.0
  %1243 = vmatprep.subr.mxu0 0.0
  %1244 = vmatpush1.msra.mxu0 0.0
  %1245 = vmatprep.subr.mxu0 0.0
  %1246 = vmatpush1.msra.mxu0 0.0
  %1247 = vmatprep.subr.mxu0 0.0
  %1248 = vmatpush1.msra.mxu0 0.0
  %1249 = vmatprep.subr.mxu0 0.0
  %1250 = vmatpush1.msra.mxu0 0.0
  %1251 = vmatprep.subr.mxu0 0.0
  %1252 = vmatpush1.msra.mxu0 0.0
  %1253 = vmatprep.subr.mxu0 0.0
  %1254 = vmatpush1.msra.mxu0 0.0
  %1255 = vmatprep.subr.mxu0 0.0
  %1256 = vmatpush1.msra.mxu0 0.0
  %1257 = vmatprep.subr.mxu0 0.0
  %1258 = vmatpush1.msra.mxu0 0.0
  %1259 = vmatprep.subr.mxu0 0.0
  %1260 = vmatpush1.msra.mxu0 0.0
  %1261 = vmatprep.subr.mxu0 0.0
  %1262 = vmatpush1.msra.mxu0 0.0
  %1263 = vmatprep.subr.mxu0 0.0
  %1264 = vmatpush1.msra.mxu0 0.0
  %1265 = vmatprep.subr.mxu0 0.0
  %1266 = vmatpush1.msra.mxu0 0.0
  %1267 = vmatprep.subr.mxu0 0.0
  %1268 = vmatpush1.msra.mxu0 0.0
  %1269 = vmatprep.subr.mxu0 0.0
  %1270 = vmatpush1.msra.mxu0 0.0
  %1271 = vmatprep.subr.mxu0 0.0
  %1272 = vmatpush1.msra.mxu0 0.0
  %1273 = vmatprep.subr.mxu0 0.0
  %1274 = vmatpush1.msra.mxu0 0.0
  %1275 = vmatprep.subr.mxu0 0.0
  %1276 = vmatpush1.msra.mxu0 0.0
  %1277 = vmatprep.subr.mxu0 0.0
  %1278 = vmatpush1.msra.mxu0 0.0
  %1279 = vmatprep.subr.mxu0 0.0
  %1280 = vmatpush1.msra.mxu0 0.0
  %1281 = vmatprep.subr.mxu0 0.0
  %1282 = vmatpush1.msra.mxu0 0.0
  %1283 = vmatprep.subr.mxu0 0.0
  %1284 = vmatpush1.msra.mxu0 0.0
  %1285 = vmatprep.subr.mxu0 0.0
  %1286 = vmatpush1.msra.mxu0 0.0
  %1287 = vmatprep.mubr.f32.mxu0 0.0
  %1288 = vmatmul.mubr.f32.gmra.mrb[0].mxu0 %v1221
  %v1289 = vpop.f32.mrb[0].mxu0
  %v1290 = vadd.f32 0.0, %v1289
  %v1291 = vpop.f32.mrb[0].mxu0
  %1292 = vdwg.mxu0
  %v1293 = vadd.f32 %v1119, %v1290
  %v1294 = vld [vmem:[%s11] sm:$0x1]
  %v1296 = vlaneseq
  %v1297 = vshrl.u32 %v1296, 7
  %v1298 = vsub.s32 0, %v1297
  %v1299 = vrot.slane %v1294, %v1298
  %v1301 = vadd.f32 %v1293, %v1299
  %v1302 = vtanh.pop %v1301
  %v1303 = vld [vmem:[%s12] sm:$0xff]
  %v1304 = vld [vmem:[%s12 + $0x8] sm:$0xff]
  %v1305 = vld [vmem:[%s12 + $0x10] sm:$0xff]
  %v1306 = vld [vmem:[%s12 + $0x18] sm:$0xff]
  %v1307 = vld [vmem:[%s12 + $0x20] sm:$0xff]
  %v1308 = vld [vmem:[%s12 + $0x28] sm:$0xff]
  %v1309 = vld [vmem:[%s12 + $0x30] sm:$0xff]
  %v1310 = vld [vmem:[%s12 + $0x38] sm:$0xff]
  %v1311 = vld [vmem:[%s12 + $0x40] sm:$0xff]
  %v1312 = vld [vmem:[%s12 + $0x48] sm:$0xff]
  %v1313 = vld [vmem:[%s12 + $0x50] sm:$0xff]
  %v1314 = vld [vmem:[%s12 + $0x58] sm:$0xff]
  %v1315 = vld [vmem:[%s12 + $0x60] sm:$0xff]
  %v1316 = vld [vmem:[%s12 + $0x68] sm:$0xff]
  %v1317 = vld [vmem:[%s12 + $0x70] sm:$0xff]
  %v1318 = vld [vmem:[%s12 + $0x78] sm:$0xff]
  %v1319 = vld [vmem:[%s13] sm:$0x1]
  %v1321 = vlaneseq
  %v1322 = vshrl.u32 %v1321, 7
  %v1323 = vsub.s32 0, %v1322
  %v1324 = vrot.slane %v1319, %v1323
  %1326 = vmatprep.subr.mxu0 0.0
  %1327 = vmatpush1.msra.mxu0 %v1303
  %1328 = vmatprep.subr.mxu0 0.0
  %1329 = vmatpush1.msra.mxu0 %v1304
  %1330 = vmatprep.subr.mxu0 0.0
  %1331 = vmatpush1.msra.mxu0 %v1305
  %1332 = vmatprep.subr.mxu0 0.0
  %1333 = vmatpush1.msra.mxu0 %v1306
  %1334 = vmatprep.subr.mxu0 0.0
  %1335 = vmatpush1.msra.mxu0 %v1307
  %1336 = vmatprep.subr.mxu0 0.0
  %1337 = vmatpush1.msra.mxu0 %v1308
  %1338 = vmatprep.subr.mxu0 0.0
  %1339 = vmatpush1.msra.mxu0 %v1309
  %1340 = vmatprep.subr.mxu0 0.0
  %1341 = vmatpush1.msra.mxu0 %v1310
  %1342 = vmatprep.subr.mxu0 0.0
  %1343 = vmatpush1.msra.mxu0 %v1311
  %1344 = vmatprep.subr.mxu0 0.0
  %1345 = vmatpush1.msra.mxu0 %v1312
  %1346 = vmatprep.subr.mxu0 0.0
  %1347 = vmatpush1.msra.mxu0 %v1313
  %1348 = vmatprep.subr.mxu0 0.0
  %1349 = vmatpush1.msra.mxu0 %v1314
  %1350 = vmatprep.subr.mxu0 0.0
  %1351 = vmatpush1.msra.mxu0 %v1315
  %1352 = vmatprep.subr.mxu0 0.0
  %1353 = vmatpush1.msra.mxu0 %v1316
  %1354 = vmatprep.subr.mxu0 0.0
  %1355 = vmatpush1.msra.mxu0 %v1317
  %1356 = vmatprep.subr.mxu0 0.0
  %1357 = vmatpush1.msra.mxu0 %v1318
  %1358 = vmatprep.subr.mxu0 0.0
  %1359 = vmatpush1.msra.mxu0 0.0
  %1360 = vmatprep.subr.mxu0 0.0
  %1361 = vmatpush1.msra.mxu0 0.0
  %1362 = vmatprep.subr.mxu0 0.0
  %1363 = vmatpush1.msra.mxu0 0.0
  %1364 = vmatprep.subr.mxu0 0.0
  %1365 = vmatpush1.msra.mxu0 0.0
  %1366 = vmatprep.subr.mxu0 0.0
  %1367 = vmatpush1.msra.mxu0 0.0
  %1368 = vmatprep.subr.mxu0 0.0
  %1369 = vmatpush1.msra.mxu0 0.0
  %1370 = vmatprep.subr.mxu0 0.0
  %1371 = vmatpush1.msra.mxu0 0.0
  %1372 = vmatprep.subr.mxu0 0.0
  %1373 = vmatpush1.msra.mxu0 0.0
  %1374 = vmatprep.subr.mxu0 0.0
  %1375 = vmatpush1.msra.mxu0 0.0
  %1376 = vmatprep.subr.mxu0 0.0
  %1377 = vmatpush1.msra.mxu0 0.0
  %1378 = vmatprep.subr.mxu0 0.0
  %1379 = vmatpush1.msra.mxu0 0.0
  %1380 = vmatprep.subr.mxu0 0.0
  %1381 = vmatpush1.msra.mxu0 0.0
  %1382 = vmatprep.subr.mxu0 0.0
  %1383 = vmatpush1.msra.mxu0 0.0
  %1384 = vmatprep.subr.mxu0 0.0
  %1385 = vmatpush1.msra.mxu0 0.0
  %1386 = vmatprep.subr.mxu0 0.0
  %1387 = vmatpush1.msra.mxu0 0.0
  %1388 = vmatprep.subr.mxu0 0.0
  %1389 = vmatpush1.msra.mxu0 0.0
  %1390 = vmatprep.mubr.f32.mxu0 0.0
  %1391 = vmatmul.mubr.f32.gmra.mrb[0].mxu0 %v1302
  %v1392 = vpop.f32.mrb[0].mxu0
  %v1393 = vadd.f32 %v1324, %v1392
  %v1394 = vpop.f32.mrb[0].mxu0
  %1395 = vdwg.mxu0
  %vm1396 = vcmask 15360
  %1397 = vst.msk [vmem:[%s14] sm:$0xff] %vm1396, %v1393
  // Predicated region
  $region58: #{tpu_custom_call.1} parent=0 // pred_check
    _
  $region59: #{tpu_custom_call.1} parent=0 // pred_check_branch
    %1399 = sbr.rel (0) target = $region61
  $region60: #{tpu_custom_call.1} parent=0 // pred_region
    _
  $region61: #{tpu_custom_call.1} parent=0 // pred_fallthru
    _
  // Predicated region
  $region62: #{tpu_custom_call.1} parent=0 // pred_check
    _
  $region63: #{tpu_custom_call.1} parent=0 // pred_check_branch
    %1401 = sbr.rel (0) target = $region65
  $region64: #{tpu_custom_call.1} parent=0 // pred_region
    _
  $region65: #{tpu_custom_call.1} parent=0 // pred_fallthru
    _

</llo_original>
